<compile_context>
chip_gen: v5e
topology: v5e:2x2
jax: 0.10.0
libtpu: 0.0.40
codegen_flags: <defaults>
</compile_context>

<pallas_src>
import math
import functools

import jax
import jax.numpy as jnp
from jax.experimental import pallas as pl
from jax.experimental.pallas import tpu as pltpu


# ----------------------------- kernel --------------------------------------


def encoder_stack_kernel(x_ref, small_ref, wqkv_ref, wo_ref, w1_ref, w2_ref,
                         o_ref, *, n_head):
    """Runs ONE encoder layer on one batch tile.

    grid = (batch_tiles, n_layer); the layer axis is innermost ("arbitrary")
    and the output block index is constant along it, so o_ref stays resident
    in VMEM and carries the activations from layer to layer.
    """
    layer = pl.program_id(1)

    # First layer for this batch tile: seed the resident activation buffer.
    @pl.when(layer == 0)
    def _():
        o_ref[...] = x_ref[...]

    bt, s, d = o_ref.shape
    m = bt * s
    d_k = d // n_head
    d_ff = w1_ref.shape[2]
    eps = 1e-5
    wdt = wqkv_ref.dtype                     # MXU input dtype (f32 or bf16)

    # ---- per-layer small params: ONE packed (8, maxw) block, static slices ----
    sm = small_ref[0].astype(jnp.float32)
    ln1_g, ln1_b = sm[0:1, :d], sm[1:2, :d]
    ln2_g, ln2_b = sm[2:3, :d], sm[3:4, :d]
    bo, b2 = sm[4:5, :d], sm[5:6, :d]
    b1 = sm[6:7, :d_ff]
    bqkv = sm[7:8, :3 * d]                   # q-part pre-scaled by 1/sqrt(d_k)

    x2d = o_ref[...].astype(jnp.float32).reshape(m, d)       # (M, D)

    def layer_norm(z, g, b):
        mu = jnp.mean(z, axis=-1, keepdims=True)
        var = jnp.mean((z - mu) ** 2, axis=-1, keepdims=True)
        return (z - mu) * jax.lax.rsqrt(var + eps) * g + b

    def matmul(a, w, b):
        # MXU matmul in the weight dtype, f32 accumulation, f32 bias add.
        return jnp.dot(a.astype(wdt), w, preferred_element_type=jnp.float32) + b

    # ---- LayerNorm 1 + fused QKV projection: one (M,D)x(D,3D) matmul ----
    # (1/sqrt(d_k) already folded into the Q weight columns at pack time.)
    xn = layer_norm(x2d, ln1_g, ln1_b)
    qkv = matmul(xn, wqkv_ref[0], bqkv)                       # (M, 3D)

    # Heads packed along the leading (batch) axis so each attention matmul is
    # ONE batched dot_general over all (head, batch) pairs.  Lane slices come
    # straight from qkv (no full-width q2d/k2d/v2d copies); at production d_k
    # (64/128) the slices are lane-aligned.
    # TODO(synk): replace slice+concat with a single pltpu.einshape relayout.
    def to_heads(off):
        return jnp.concatenate(
            [qkv[:, off + h * d_k: off + (h + 1) * d_k].reshape(bt, s, d_k)
             for h in range(n_head)], axis=0).astype(wdt)

    qh = to_heads(0)                                          # (H*bt, S, d_k)
    kh = to_heads(d)
    vh = to_heads(2 * d)

    # ---- attention: two batched MXU matmuls over all (head, batch) pairs ----
    scores = jnp.einsum("nqd,nkd->nqk", qh, kh,
                        preferred_element_type=jnp.float32)   # (H*bt, S, S)
    # TODO(synk): for S >= ~512 switch to KV-chunked online softmax (flash).
    scores = scores - jnp.max(scores, axis=-1, keepdims=True)
    p = jnp.exp(scores)
    denom = jnp.sum(p, axis=-1, keepdims=True)
    ctx = jnp.einsum("nqk,nkd->nqd", p.astype(wdt), vh,
                     preferred_element_type=jnp.float32)      # (H*bt, S, d_k)
    # Softmax normalizer applied AFTER the PV matmul (linear, so identical);
    # EUP approximate reciprocal + one Newton step: no VALU divide, f32 parity.
    r = pl.reciprocal(denom, approx=True)
    r = r * (2.0 - denom * r)
    ctx = ctx * r

    # Back to (M, D) with heads along lanes — matches torch's
    # output.transpose(1, 2).contiguous().view(B, S, D).
    # Leading-axis slices are free; one lane-axis concat materializes attn.
    attn = jnp.concatenate(
        [ctx[h * bt:(h + 1) * bt].reshape(m, d_k) for h in range(n_head)],
        axis=-1)
    attn = matmul(attn, wo_ref[0], bo)

    x1 = x2d + attn                              # residual (dropout = identity)

    # ---- LayerNorm 2 + FeedForward ----
    xn2 = layer_norm(x1, ln2_g, ln2_b)
    h1 = jnp.maximum(matmul(xn2, w1_ref[0], b1), 0.0)         # ReLU
    ff = matmul(h1, w2_ref[0], b2)

    y = x1 + ff                                  # residual (dropout = identity)
    o_ref[...] = y.reshape(bt, s, d).astype(o_ref.dtype)


# ----------------------------- packing --------------------------------------


def pack_stacked_params(layer_params, n_head, weight_dtype=jnp.float32):
    """Stack per-layer params on a leading layer axis.

    * wq/wk/wv fused into one (D, 3D) weight; the Q columns (and bq) are
      pre-scaled by 1/sqrt(d_k) so the kernel never scales activations.
    * All 1-row params (ln gammas/betas and biases) are packed into ONE
      (n_layer, 8, maxw) f32 array -> a single DMA descriptor per layer step.
    * weight_dtype: storage dtype of the matmul weights.  Use jnp.bfloat16 in
      production (halves weight DMA bytes, doubles MXU rate — required to fit
      v7x's 64 MiB VMEM at realistic D/d_ff); f32 keeps exact parity with the
      f32 reference.  LayerNorm params and biases always stay f32.
    """
    D = layer_params[0]["wq"].shape[0]
    d_ff = layer_params[0]["w1"].shape[1]
    d_k = D // n_head
    scale = 1.0 / math.sqrt(d_k)
    maxw = max(3 * D, d_ff)

    def pad_row(v):
        v = v.astype(jnp.float32)
        return jnp.pad(v, ((0, 0), (0, maxw - v.shape[1])))

    wqkv = jnp.stack(
        [jnp.concatenate([p["wq"] * scale, p["wk"], p["wv"]], axis=1)
         for p in layer_params], axis=0).astype(weight_dtype)
    wo = jnp.stack([p["wo"] for p in layer_params], axis=0).astype(weight_dtype)
    w1 = jnp.stack([p["w1"] for p in layer_params], axis=0).astype(weight_dtype)
    w2 = jnp.stack([p["w2"] for p in layer_params], axis=0).astype(weight_dtype)

    small = jnp.stack([
        jnp.concatenate([
            pad_row(p["ln1_g"]), pad_row(p["ln1_b"]),
            pad_row(p["ln2_g"]), pad_row(p["ln2_b"]),
            pad_row(p["bo"]), pad_row(p["b2"]), pad_row(p["b1"]),
            pad_row(jnp.concatenate([p["bq"] * scale, p["bk"], p["bv"]],
                                    axis=1)),
        ], axis=0)
        for p in layer_params], axis=0)          # (n_layer, 8, maxw) f32

    return dict(wqkv=wqkv, wo=wo, w1=w1, w2=w2, small=small)


# ----------------------------- wrapper --------------------------------------


def transformer_encoder(x, layer_params, *, n_head, block_b=None,
                        weight_dtype=jnp.float32, vmem_limit_bytes=None):
    """x: (B, S, D) float32. layer_params: list of per-layer param dicts.

    NOTE: for best TPU efficiency S and D should be multiples of 128 (and
    d_ff a multiple of 128) — lane-dense tiles; the demo below is tiny.
    """
    B, S, D = x.shape
    assert D % n_head == 0, "d_model must be divisible by n_head"
    d_k = D // n_head
    n_layer = len(layer_params)
    d_ff = layer_params[0]["w1"].shape[1]

    if block_b is None:
        # Whole batch per grid step maximizes matmul M and streams the weight
        # stack exactly once per call (best on v5e/v6e).  On v7x set
        # block_b = B // 2 so the "parallel" batch axis feeds both TensorCores
        # — but only when MXU-bound (it doubles weight HBM traffic).
        block_b = B
    assert B % block_b == 0, "batch must be divisible by block_b"
    nb = B // block_b

    sp = pack_stacked_params(layer_params, n_head, weight_dtype)

    kernel = functools.partial(encoder_stack_kernel, n_head=n_head)

    def wspec(shape):
        # Per-layer weight block: index changes only along the layer axis, so
        # the next layer's weights prefetch while this layer computes.
        return pl.BlockSpec((1,) + tuple(shape), lambda b, l: (l, 0, 0))

    # x is consumed only at layer == 0 and its block index is constant along
    # the layer axis -> single-buffer it (saves a full activation tile of VMEM
    # at zero perf cost).  Fall back gracefully if BlockSpec has no
    # pipeline_mode kwarg.
    try:
        x_spec = pl.BlockSpec((block_b, S, D), lambda b, l: (b, 0, 0),
                              pipeline_mode=pl.Buffered(1))
    except TypeError:
        x_spec = pl.BlockSpec((block_b, S, D), lambda b, l: (b, 0, 0))

    in_specs = [
        x_spec,
        wspec(sp["small"].shape[1:]),                        # packed 1-row params
        wspec((D, 3 * D)),                                   # wqkv
        wspec((D, D)),                                       # wo
        wspec((D, d_ff)),                                    # w1
        wspec((d_ff, D)),                                    # w2
    ]

    # Advisory cost estimate so XLA schedules surrounding ops correctly.
    M = B * S
    flops = n_layer * (2 * M * D * (3 * D)      # fused QKV projection
                       + 2 * M * D * D          # output projection
                       + 4 * M * D * d_ff       # FFN (two matmuls)
                       + 4 * n_head * B * S * S * d_k)   # attention matmuls
    transcendentals = n_layer * n_head * B * S * S           # softmax exp
    w_bytes = sum(int(a.size) * a.dtype.itemsize
                  for a in (sp["wqkv"], sp["wo"], sp["w1"], sp["w2"],
                            sp["small"]))
    bytes_accessed = 2 * B * S * D * x.dtype.itemsize + nb * w_bytes

    cp_kwargs = dict(dimension_semantics=("parallel", "arbitrary"))
    if vmem_limit_bytes is not None:
        # Raise the scoped-VMEM limit for realistic D/d_ff where whole-layer
        # weights are held resident (defaults: 16 MiB v5e / 32 MiB v6e).  On
        # v7x (64 MiB/TC) use bf16 weights and keep this <= ~48 MiB.
        cp_kwargs["vmem_limit_bytes"] = vmem_limit_bytes

    return pl.pallas_call(
        kernel,
        out_shape=jax.ShapeDtypeStruct((B, S, D), x.dtype),
        grid_spec=pltpu.PrefetchScalarGridSpec(
            num_scalar_prefetch=0,
            # layer axis innermost: activations stay resident in the out block
            grid=(nb, n_layer),
            in_specs=in_specs,
            out_specs=pl.BlockSpec((block_b, S, D), lambda b, l: (b, 0, 0)),
        ),
        compiler_params=pltpu.CompilerParams(**cp_kwargs),
        cost_estimate=pl.CostEstimate(flops=int(flops),
                                      transcendentals=int(transcendentals),
                                      bytes_accessed=int(bytes_accessed)),
    )(x, sp["small"], sp["wqkv"], sp["wo"], sp["w1"], sp["w2"])


# ---------------- parameter init (deterministic, synthetic) ----------------


def init_layer_params(key, d_model, d_ff):
    ks = jax.random.split(key, 12)
    scale_d = 1.0 / math.sqrt(d_model)
    scale_f = 1.0 / math.sqrt(d_ff)

    def lin(kw, kb, d_in, d_out, s):
        # torch Linear stores (out, in); we store the transposed (in, out)
        # so the kernel computes x @ W (+ b) == x @ W_torch.T + b.
        w = jax.random.uniform(kw, (d_in, d_out), jnp.float32, -s, s)
        b = jax.random.uniform(kb, (1, d_out), jnp.float32, -s, s)
        return w, b

    wq, bq = lin(ks[0], ks[1], d_model, d_model, scale_d)
    wk, bk = lin(ks[2], ks[3], d_model, d_model, scale_d)
    wv, bv = lin(ks[4], ks[5], d_model, d_model, scale_d)
    wo, bo = lin(ks[6], ks[7], d_model, d_model, scale_d)
    w1, b1 = lin(ks[8], ks[9], d_model, d_ff, scale_d)
    w2, b2 = lin(ks[10], ks[11], d_ff, d_model, scale_f)

    return {
        "ln1_g": jnp.ones((1, d_model), jnp.float32),
        "ln1_b": jnp.zeros((1, d_model), jnp.float32),
        "ln2_g": jnp.ones((1, d_model), jnp.float32),
        "ln2_b": jnp.zeros((1, d_model), jnp.float32),
        "wq": wq, "bq": bq, "wk": wk, "bk": bk,
        "wv": wv, "bv": bv, "wo": wo, "bo": bo,
        "w1": w1, "b1": b1, "w2": w2, "b2": b2,
    }


# ---------------- pure-JAX reference for correctness check ----------------


def reference_layer(x, p, n_head):
    D = x.shape[-1]
    d_k = D // n_head
    eps = 1e-5

    def ln(z, g, b):
        mu = jnp.mean(z, axis=-1, keepdims=True)
        var = jnp.mean((z - mu) ** 2, axis=-1, keepdims=True)
        return (z - mu) / jnp.sqrt(var + eps) * g + b

    xn = ln(x, p["ln1_g"][0], p["ln1_b"][0])
    q = xn @ p["wq"] + p["bq"][0]
    k = xn @ p["wk"] + p["bk"][0]
    v = xn @ p["wv"] + p["bv"][0]
    B, S, _ = x.shape
    q = q.reshape(B, S, n_head, d_k).transpose(0, 2, 1, 3)
    k = k.reshape(B, S, n_head, d_k).transpose(0, 2, 1, 3)
    v = v.reshape(B, S, n_head, d_k).transpose(0, 2, 1, 3)
    s = jnp.einsum("bhqd,bhkd->bhqk", q, k) / math.sqrt(d_k)
    s = jax.nn.softmax(s, axis=-1)
    o = jnp.einsum("bhqk,bhkd->bhqd", s, v).transpose(0, 2, 1, 3).reshape(B, S, D)
    o = o @ p["wo"] + p["bo"][0]
    x1 = x + o
    xn2 = ln(x1, p["ln2_g"][0], p["ln2_b"][0])
    ff = jax.nn.relu(xn2 @ p["w1"] + p["b1"][0]) @ p["w2"] + p["b2"][0]
    return x1 + ff


if __name__ == "__main__":
    # Small config consistent with the module's forward: (B, S, d_model)
    B, S, d_model, n_head, d_ff, n_layer = 2, 8, 32, 4, 64, 2

    key = jax.random.PRNGKey(0)
    kx, *layer_keys = jax.random.split(key, n_layer + 1)
    x = jax.random.normal(kx, (B, S, d_model), jnp.float32)

    layer_params = [init_layer_params(k, d_model, d_ff) for k in layer_keys]

    out = transformer_encoder(
        x, layer_params, n_head=n_head,
        vmem_limit_bytes=32 * 1024 * 1024)
    out = jax.block_until_ready(out)

    # sanity check vs pure-JAX reference (f32 everywhere in the demo)
    ref = x
    for p in layer_params:
        ref = reference_layer(ref, p, n_head)
    assert jnp.allclose(out, ref, atol=3e-4, rtol=3e-4), "mismatch vs reference"

    print("KERNEL_OK")
</pallas_src>

<mosaic_0001>
module attributes {stable_mosaic.version = 11 : i64} {
  func.func @encoder_stack_kernel(%arg0: i32, %arg1: i32, %arg2: memref<2x8x32xf32, #tpu.memory_space<vmem>>, %arg3: memref<1x8x96xf32, #tpu.memory_space<vmem>>, %arg4: memref<1x32x96xf32, #tpu.memory_space<vmem>>, %arg5: memref<1x32x32xf32, #tpu.memory_space<vmem>>, %arg6: memref<1x32x64xf32, #tpu.memory_space<vmem>>, %arg7: memref<1x64x32xf32, #tpu.memory_space<vmem>>, %arg8: memref<2x8x32xf32, #tpu.memory_space<vmem>>) attributes {dimension_semantics = [#tpu.dimension_semantics<parallel>, #tpu.dimension_semantics<arbitrary>], iteration_bounds = array<i64: 1, 2>, scalar_prefetch = 0 : i64, scratch_operands = 0 : i64, tpu.core_type = #tpu.core_type<tc>, window_params = [{pipeline_mode = #tpu.pipeline_mode<synchronous>, transform_indices = @transform_0, window_bounds = array<i64: 2, 8, 32>}, {transform_indices = @transform_1, window_bounds = array<i64: 1, 8, 96>}, {transform_indices = @transform_2, window_bounds = array<i64: 1, 32, 96>}, {transform_indices = @transform_3, window_bounds = array<i64: 1, 32, 32>}, {transform_indices = @transform_4, window_bounds = array<i64: 1, 32, 64>}, {transform_indices = @transform_5, window_bounds = array<i64: 1, 64, 32>}, {transform_indices = @transform_6, window_bounds = array<i64: 2, 8, 32>}]} {
    %c0_i32 = arith.constant 0 : i32
    %0 = arith.cmpi eq, %arg1, %c0_i32 : i32
    %1 = arith.extui %0 : i1 to i32
    %c0_i32_0 = arith.constant 0 : i32
    %2 = arith.cmpi ne, %1, %c0_i32_0 : i32
    scf.if %2 {
      %c0_40 = arith.constant 0 : index
      %c0_41 = arith.constant 0 : index
      %c0_42 = arith.constant 0 : index
      %137 = vector.load %arg2[%c0_40, %c0_41, %c0_42] : memref<2x8x32xf32, #tpu.memory_space<vmem>>, vector<2x8x32xf32>
      %c0_43 = arith.constant 0 : index
      %c0_44 = arith.constant 0 : index
      %c0_45 = arith.constant 0 : index
      %138 = vector.load %arg8[%c0_43, %c0_44, %c0_45] : memref<2x8x32xf32, #tpu.memory_space<vmem>>, vector<2x8x32xf32>
      tpu.vector_store %arg8[%c0_43, %c0_44, %c0_45], %137 {strides = array<i32>} : memref<2x8x32xf32, #tpu.memory_space<vmem>>, vector<2x8x32xf32>,
    } else {
    }
    %c0 = arith.constant 0 : index
    %c0_1 = arith.constant 0 : index
    %c0_2 = arith.constant 0 : index
    %3 = vector.load %arg3[%c0, %c0_1, %c0_2] : memref<1x8x96xf32, #tpu.memory_space<vmem>>, vector<1x8x96xf32>
    %4 = vector.shape_cast %3 : vector<1x8x96xf32> to vector<8x96xf32>
    %5 = vector.extract_strided_slice %4 {offsets = [0, 0], sizes = [1, 32], strides = [1, 1]} : vector<8x96xf32> to vector<1x32xf32>
    %6 = vector.extract_strided_slice %4 {offsets = [1, 0], sizes = [1, 32], strides = [1, 1]} : vector<8x96xf32> to vector<1x32xf32>
    %7 = vector.extract_strided_slice %4 {offsets = [2, 0], sizes = [1, 32], strides = [1, 1]} : vector<8x96xf32> to vector<1x32xf32>
    %8 = vector.extract_strided_slice %4 {offsets = [3, 0], sizes = [1, 32], strides = [1, 1]} : vector<8x96xf32> to vector<1x32xf32>
    %9 = vector.extract_strided_slice %4 {offsets = [4, 0], sizes = [1, 32], strides = [1, 1]} : vector<8x96xf32> to vector<1x32xf32>
    %10 = vector.extract_strided_slice %4 {offsets = [5, 0], sizes = [1, 32], strides = [1, 1]} : vector<8x96xf32> to vector<1x32xf32>
    %11 = vector.extract_strided_slice %4 {offsets = [6, 0], sizes = [1, 64], strides = [1, 1]} : vector<8x96xf32> to vector<1x64xf32>
    %12 = vector.extract_strided_slice %4 {offsets = [7, 0], sizes = [1, 96], strides = [1, 1]} : vector<8x96xf32> to vector<1x96xf32>
    %c0_3 = arith.constant 0 : index
    %c0_4 = arith.constant 0 : index
    %c0_5 = arith.constant 0 : index
    %13 = vector.load %arg8[%c0_3, %c0_4, %c0_5] : memref<2x8x32xf32, #tpu.memory_space<vmem>>, vector<2x8x32xf32>
    %14 = vector.shape_cast %13 : vector<2x8x32xf32> to vector<16x32xf32>
    %cst = arith.constant dense<0.000000e+00> : vector<16xf32>
    %15 = vector.multi_reduction <add>, %14, %cst [1] : vector<16x32xf32> to vector<16xf32>
    %16 = vector.shape_cast %15 : vector<16xf32> to vector<16x1xf32>
    %cst_6 = arith.constant 3.200000e+01 : f32
    %17 = vector.broadcast %cst_6 : f32 to vector<16x1xf32>
    %18 = arith.divf %16, %17 : vector<16x1xf32>
    %19 = vector.broadcast %18 : vector<16x1xf32> to vector<16x32xf32>
    %20 = arith.subf %14, %19 : vector<16x32xf32>
    %21 = arith.mulf %20, %20 : vector<16x32xf32>
    %cst_7 = arith.constant dense<0.000000e+00> : vector<16xf32>
    %22 = vector.multi_reduction <add>, %21, %cst_7 [1] : vector<16x32xf32> to vector<16xf32>
    %23 = vector.shape_cast %22 : vector<16xf32> to vector<16x1xf32>
    %cst_8 = arith.constant 3.200000e+01 : f32
    %24 = vector.broadcast %cst_8 : f32 to vector<16x1xf32>
    %25 = arith.divf %23, %24 : vector<16x1xf32>
    %26 = vector.broadcast %18 : vector<16x1xf32> to vector<16x32xf32>
    %27 = arith.subf %14, %26 : vector<16x32xf32>
    %cst_9 = arith.constant 9.99999974E-6 : f32
    %28 = vector.broadcast %cst_9 : f32 to vector<16x1xf32>
    %29 = arith.addf %25, %28 : vector<16x1xf32>
    %30 = math.rsqrt %29 : vector<16x1xf32>
    %31 = vector.broadcast %30 : vector<16x1xf32> to vector<16x32xf32>
    %32 = arith.mulf %27, %31 : vector<16x32xf32>
    %33 = vector.broadcast %5 : vector<1x32xf32> to vector<16x32xf32>
    %34 = arith.mulf %32, %33 : vector<16x32xf32>
    %35 = vector.broadcast %6 : vector<1x32xf32> to vector<16x32xf32>
    %36 = arith.addf %34, %35 : vector<16x32xf32>
    %c0_10 = arith.constant 0 : index
    %c0_11 = arith.constant 0 : index
    %c0_12 = arith.constant 0 : index
    %37 = vector.load %arg4[%c0_10, %c0_11, %c0_12] : memref<1x32x96xf32, #tpu.memory_space<vmem>>, vector<1x32x96xf32>
    %38 = vector.shape_cast %37 : vector<1x32x96xf32> to vector<32x96xf32>
    %cst_13 = arith.constant dense<0.000000e+00> : vector<16x96xf32>
    %39 = tpu.matmul %36, %38, %cst_13 {dimension_numbers = #tpu.dot_dimension_numbers<[1], [0], [0], [1], [0, 0, 1, 1], [], []>} : vector<16x32xf32>, vector<32x96xf32>, vector<16x96xf32> -> vector<16x96xf32>
    %40 = vector.broadcast %12 : vector<1x96xf32> to vector<16x96xf32>
    %41 = arith.addf %39, %40 : vector<16x96xf32>
    %42 = vector.extract_strided_slice %41 {offsets = [0, 0], sizes = [16, 8], strides = [1, 1]} : vector<16x96xf32> to vector<16x8xf32>
    %43 = vector.shape_cast %42 : vector<16x8xf32> to vector<2x8x8xf32>
    %44 = vector.extract_strided_slice %41 {offsets = [0, 8], sizes = [16, 8], strides = [1, 1]} : vector<16x96xf32> to vector<16x8xf32>
    %45 = vector.shape_cast %44 : vector<16x8xf32> to vector<2x8x8xf32>
    %46 = vector.extract_strided_slice %41 {offsets = [0, 16], sizes = [16, 8], strides = [1, 1]} : vector<16x96xf32> to vector<16x8xf32>
    %47 = vector.shape_cast %46 : vector<16x8xf32> to vector<2x8x8xf32>
    %48 = vector.extract_strided_slice %41 {offsets = [0, 24], sizes = [16, 8], strides = [1, 1]} : vector<16x96xf32> to vector<16x8xf32>
    %49 = vector.shape_cast %48 : vector<16x8xf32> to vector<2x8x8xf32>
    %50 = tpu.concatenate %43, %45, %47, %49 in 0 : vector<2x8x8xf32>, vector<2x8x8xf32>, vector<2x8x8xf32>, vector<2x8x8xf32> -> vector<8x8x8xf32>
    %51 = vector.extract_strided_slice %41 {offsets = [0, 32], sizes = [16, 8], strides = [1, 1]} : vector<16x96xf32> to vector<16x8xf32>
    %52 = vector.shape_cast %51 : vector<16x8xf32> to vector<2x8x8xf32>
    %53 = vector.extract_strided_slice %41 {offsets = [0, 40], sizes = [16, 8], strides = [1, 1]} : vector<16x96xf32> to vector<16x8xf32>
    %54 = vector.shape_cast %53 : vector<16x8xf32> to vector<2x8x8xf32>
    %55 = vector.extract_strided_slice %41 {offsets = [0, 48], sizes = [16, 8], strides = [1, 1]} : vector<16x96xf32> to vector<16x8xf32>
    %56 = vector.shape_cast %55 : vector<16x8xf32> to vector<2x8x8xf32>
    %57 = vector.extract_strided_slice %41 {offsets = [0, 56], sizes = [16, 8], strides = [1, 1]} : vector<16x96xf32> to vector<16x8xf32>
    %58 = vector.shape_cast %57 : vector<16x8xf32> to vector<2x8x8xf32>
    %59 = tpu.concatenate %52, %54, %56, %58 in 0 : vector<2x8x8xf32>, vector<2x8x8xf32>, vector<2x8x8xf32>, vector<2x8x8xf32> -> vector<8x8x8xf32>
    %60 = vector.extract_strided_slice %41 {offsets = [0, 64], sizes = [16, 8], strides = [1, 1]} : vector<16x96xf32> to vector<16x8xf32>
    %61 = vector.shape_cast %60 : vector<16x8xf32> to vector<2x8x8xf32>
    %62 = vector.extract_strided_slice %41 {offsets = [0, 72], sizes = [16, 8], strides = [1, 1]} : vector<16x96xf32> to vector<16x8xf32>
    %63 = vector.shape_cast %62 : vector<16x8xf32> to vector<2x8x8xf32>
    %64 = vector.extract_strided_slice %41 {offsets = [0, 80], sizes = [16, 8], strides = [1, 1]} : vector<16x96xf32> to vector<16x8xf32>
    %65 = vector.shape_cast %64 : vector<16x8xf32> to vector<2x8x8xf32>
    %66 = vector.extract_strided_slice %41 {offsets = [0, 88], sizes = [16, 8], strides = [1, 1]} : vector<16x96xf32> to vector<16x8xf32>
    %67 = vector.shape_cast %66 : vector<16x8xf32> to vector<2x8x8xf32>
    %68 = tpu.concatenate %61, %63, %65, %67 in 0 : vector<2x8x8xf32>, vector<2x8x8xf32>, vector<2x8x8xf32>, vector<2x8x8xf32> -> vector<8x8x8xf32>
    "tpu.trace_start"() <{level = 10 : i32, message = "nqd,nkd->nqk"}> : () -> ()
    %cst_14 = arith.constant dense<0.000000e+00> : vector<8x8x8xf32>
    %69 = tpu.matmul %50, %59, %cst_14 {dimension_numbers = #tpu.dot_dimension_numbers<[2], [2], [1], [1], [0, 0, 0, 1, 1, 1], [0], [0]>} : vector<8x8x8xf32>, vector<8x8x8xf32>, vector<8x8x8xf32> -> vector<8x8x8xf32>
    "tpu.trace_stop"() : () -> ()
    %cst_15 = arith.constant dense<0xFF800000> : vector<8x8xf32>
    %70 = vector.multi_reduction <maximumf>, %69, %cst_15 [2] : vector<8x8x8xf32> to vector<8x8xf32>
    %71 = vector.shape_cast %70 : vector<8x8xf32> to vector<8x8x1xf32>
    %72 = vector.broadcast %71 : vector<8x8x1xf32> to vector<8x8x8xf32>
    %73 = arith.subf %69, %72 : vector<8x8x8xf32>
    %74 = math.exp %73 : vector<8x8x8xf32>
    %cst_16 = arith.constant dense<0.000000e+00> : vector<8x8xf32>
    %75 = vector.multi_reduction <add>, %74, %cst_16 [2] : vector<8x8x8xf32> to vector<8x8xf32>
    %76 = vector.shape_cast %75 : vector<8x8xf32> to vector<8x8x1xf32>
    "tpu.trace_start"() <{level = 10 : i32, message = "nqk,nkd->nqd"}> : () -> ()
    %cst_17 = arith.constant dense<0.000000e+00> : vector<8x8x8xf32>
    %77 = tpu.matmul %74, %68, %cst_17 {dimension_numbers = #tpu.dot_dimension_numbers<[2], [1], [1], [2], [0, 0, 0, 1, 1, 2], [0], [0]>} : vector<8x8x8xf32>, vector<8x8x8xf32>, vector<8x8x8xf32> -> vector<8x8x8xf32>
    "tpu.trace_stop"() : () -> ()
    %78 = tpu.reciprocal %76 {approx = true} : vector<8x8x1xf32> -> vector<8x8x1xf32>
    %79 = arith.mulf %76, %78 : vector<8x8x1xf32>
    %cst_18 = arith.constant 2.000000e+00 : f32
    %80 = vector.broadcast %cst_18 : f32 to vector<8x8x1xf32>
    %81 = arith.subf %80, %79 : vector<8x8x1xf32>
    %82 = arith.mulf %78, %81 : vector<8x8x1xf32>
    %83 = vector.broadcast %82 : vector<8x8x1xf32> to vector<8x8x8xf32>
    %84 = arith.mulf %77, %83 : vector<8x8x8xf32>
    %85 = vector.extract_strided_slice %84 {offsets = [0, 0, 0], sizes = [2, 8, 8], strides = [1, 1, 1]} : vector<8x8x8xf32> to vector<2x8x8xf32>
    %86 = vector.shape_cast %85 : vector<2x8x8xf32> to vector<16x8xf32>
    %87 = vector.extract_strided_slice %84 {offsets = [2, 0, 0], sizes = [2, 8, 8], strides = [1, 1, 1]} : vector<8x8x8xf32> to vector<2x8x8xf32>
    %88 = vector.shape_cast %87 : vector<2x8x8xf32> to vector<16x8xf32>
    %89 = vector.extract_strided_slice %84 {offsets = [4, 0, 0], sizes = [2, 8, 8], strides = [1, 1, 1]} : vector<8x8x8xf32> to vector<2x8x8xf32>
    %90 = vector.shape_cast %89 : vector<2x8x8xf32> to vector<16x8xf32>
    %91 = vector.extract_strided_slice %84 {offsets = [6, 0, 0], sizes = [2, 8, 8], strides = [1, 1, 1]} : vector<8x8x8xf32> to vector<2x8x8xf32>
    %92 = vector.shape_cast %91 : vector<2x8x8xf32> to vector<16x8xf32>
    %93 = tpu.concatenate %86, %88, %90, %92 in 1 : vector<16x8xf32>, vector<16x8xf32>, vector<16x8xf32>, vector<16x8xf32> -> vector<16x32xf32>
    %c0_19 = arith.constant 0 : index
    %c0_20 = arith.constant 0 : index
    %c0_21 = arith.constant 0 : index
    %94 = vector.load %arg5[%c0_19, %c0_20, %c0_21] : memref<1x32x32xf32, #tpu.memory_space<vmem>>, vector<1x32x32xf32>
    %95 = vector.shape_cast %94 : vector<1x32x32xf32> to vector<32x32xf32>
    %cst_22 = arith.constant dense<0.000000e+00> : vector<16x32xf32>
    %96 = tpu.matmul %93, %95, %cst_22 {dimension_numbers = #tpu.dot_dimension_numbers<[1], [0], [0], [1], [0, 0, 1, 1], [], []>} : vector<16x32xf32>, vector<32x32xf32>, vector<16x32xf32> -> vector<16x32xf32>
    %97 = vector.broadcast %9 : vector<1x32xf32> to vector<16x32xf32>
    %98 = arith.addf %96, %97 : vector<16x32xf32>
    %99 = arith.addf %14, %98 : vector<16x32xf32>
    %cst_23 = arith.constant dense<0.000000e+00> : vector<16xf32>
    %100 = vector.multi_reduction <add>, %99, %cst_23 [1] : vector<16x32xf32> to vector<16xf32>
    %101 = vector.shape_cast %100 : vector<16xf32> to vector<16x1xf32>
    %cst_24 = arith.constant 3.200000e+01 : f32
    %102 = vector.broadcast %cst_24 : f32 to vector<16x1xf32>
    %103 = arith.divf %101, %102 : vector<16x1xf32>
    %104 = vector.broadcast %103 : vector<16x1xf32> to vector<16x32xf32>
    %105 = arith.subf %99, %104 : vector<16x32xf32>
    %106 = arith.mulf %105, %105 : vector<16x32xf32>
    %cst_25 = arith.constant dense<0.000000e+00> : vector<16xf32>
    %107 = vector.multi_reduction <add>, %106, %cst_25 [1] : vector<16x32xf32> to vector<16xf32>
    %108 = vector.shape_cast %107 : vector<16xf32> to vector<16x1xf32>
    %cst_26 = arith.constant 3.200000e+01 : f32
    %109 = vector.broadcast %cst_26 : f32 to vector<16x1xf32>
    %110 = arith.divf %108, %109 : vector<16x1xf32>
    %111 = vector.broadcast %103 : vector<16x1xf32> to vector<16x32xf32>
    %112 = arith.subf %99, %111 : vector<16x32xf32>
    %cst_27 = arith.constant 9.99999974E-6 : f32
    %113 = vector.broadcast %cst_27 : f32 to vector<16x1xf32>
    %114 = arith.addf %110, %113 : vector<16x1xf32>
    %115 = math.rsqrt %114 : vector<16x1xf32>
    %116 = vector.broadcast %115 : vector<16x1xf32> to vector<16x32xf32>
    %117 = arith.mulf %112, %116 : vector<16x32xf32>
    %118 = vector.broadcast %7 : vector<1x32xf32> to vector<16x32xf32>
    %119 = arith.mulf %117, %118 : vector<16x32xf32>
    %120 = vector.broadcast %8 : vector<1x32xf32> to vector<16x32xf32>
    %121 = arith.addf %119, %120 : vector<16x32xf32>
    %c0_28 = arith.constant 0 : index
    %c0_29 = arith.constant 0 : index
    %c0_30 = arith.constant 0 : index
    %122 = vector.load %arg6[%c0_28, %c0_29, %c0_30] : memref<1x32x64xf32, #tpu.memory_space<vmem>>, vector<1x32x64xf32>
    %123 = vector.shape_cast %122 : vector<1x32x64xf32> to vector<32x64xf32>
    %cst_31 = arith.constant dense<0.000000e+00> : vector<16x64xf32>
    %124 = tpu.matmul %121, %123, %cst_31 {dimension_numbers = #tpu.dot_dimension_numbers<[1], [0], [0], [1], [0, 0, 1, 1], [], []>} : vector<16x32xf32>, vector<32x64xf32>, vector<16x64xf32> -> vector<16x64xf32>
    %125 = vector.broadcast %11 : vector<1x64xf32> to vector<16x64xf32>
    %126 = arith.addf %124, %125 : vector<16x64xf32>
    %cst_32 = arith.constant 0.000000e+00 : f32
    %127 = vector.broadcast %cst_32 : f32 to vector<16x64xf32>
    %128 = arith.maximumf %126, %127 : vector<16x64xf32>
    %c0_33 = arith.constant 0 : index
    %c0_34 = arith.constant 0 : index
    %c0_35 = arith.constant 0 : index
    %129 = vector.load %arg7[%c0_33, %c0_34, %c0_35] : memref<1x64x32xf32, #tpu.memory_space<vmem>>, vector<1x64x32xf32>
    %130 = vector.shape_cast %129 : vector<1x64x32xf32> to vector<64x32xf32>
    %cst_36 = arith.constant dense<0.000000e+00> : vector<16x32xf32>
    %131 = tpu.matmul %128, %130, %cst_36 {dimension_numbers = #tpu.dot_dimension_numbers<[1], [0], [0], [1], [0, 0, 1, 1], [], []>} : vector<16x64xf32>, vector<64x32xf32>, vector<16x32xf32> -> vector<16x32xf32>
    %132 = vector.broadcast %10 : vector<1x32xf32> to vector<16x32xf32>
    %133 = arith.addf %131, %132 : vector<16x32xf32>
    %134 = arith.addf %99, %133 : vector<16x32xf32>
    %135 = vector.shape_cast %134 : vector<16x32xf32> to vector<2x8x32xf32>
    %c0_37 = arith.constant 0 : index
    %c0_38 = arith.constant 0 : index
    %c0_39 = arith.constant 0 : index
    %136 = vector.load %arg8[%c0_37, %c0_38, %c0_39] : memref<2x8x32xf32, #tpu.memory_space<vmem>>, vector<2x8x32xf32>
    tpu.vector_store %arg8[%c0_37, %c0_38, %c0_39], %135 {strides = array<i32>} : memref<2x8x32xf32, #tpu.memory_space<vmem>>, vector<2x8x32xf32>,
    return
  }
  func.func @transform_0(%arg0: i32, %arg1: i32) -> (i32, i32, i32) {
    %c0_i32 = arith.constant 0 : i32
    %c0_i32_0 = arith.constant 0 : i32
    %c0_i32_1 = arith.constant 0 : i32
    return %arg0, %c0_i32, %c0_i32_0 : i32, i32, i32
  }
  func.func @transform_1(%arg0: i32, %arg1: i32) -> (i32, i32, i32) {
    %c0_i32 = arith.constant 0 : i32
    %c0_i32_0 = arith.constant 0 : i32
    %c0_i32_1 = arith.constant 0 : i32
    return %arg1, %c0_i32, %c0_i32_0 : i32, i32, i32
  }
  func.func @transform_2(%arg0: i32, %arg1: i32) -> (i32, i32, i32) {
    %c0_i32 = arith.constant 0 : i32
    %c0_i32_0 = arith.constant 0 : i32
    %c0_i32_1 = arith.constant 0 : i32
    return %arg1, %c0_i32, %c0_i32_0 : i32, i32, i32
  }
  func.func @transform_3(%arg0: i32, %arg1: i32) -> (i32, i32, i32) {
    %c0_i32 = arith.constant 0 : i32
    %c0_i32_0 = arith.constant 0 : i32
    %c0_i32_1 = arith.constant 0 : i32
    return %arg1, %c0_i32, %c0_i32_0 : i32, i32, i32
  }
  func.func @transform_4(%arg0: i32, %arg1: i32) -> (i32, i32, i32) {
    %c0_i32 = arith.constant 0 : i32
    %c0_i32_0 = arith.constant 0 : i32
    %c0_i32_1 = arith.constant 0 : i32
    return %arg1, %c0_i32, %c0_i32_0 : i32, i32, i32
  }
  func.func @transform_5(%arg0: i32, %arg1: i32) -> (i32, i32, i32) {
    %c0_i32 = arith.constant 0 : i32
    %c0_i32_0 = arith.constant 0 : i32
    %c0_i32_1 = arith.constant 0 : i32
    return %arg1, %c0_i32, %c0_i32_0 : i32, i32, i32
  }
  func.func @transform_6(%arg0: i32, %arg1: i32) -> (i32, i32, i32) {
    %c0_i32 = arith.constant 0 : i32
    %c0_i32_0 = arith.constant 0 : i32
    %c0_i32_1 = arith.constant 0 : i32
    return %arg0, %c0_i32, %c0_i32_0 : i32, i32, i32
  }
}

</mosaic_0001>

<llo_original>
// kernel: tpu_custom_call.1
$region0: #{tpu_custom_call.1}
  #allocation0 [shape = 'u32[]', space=smem, size = 0x4, offset = 0x4, fixed_abs, tag = 'smem constant byte address 0x4 - core index']
  #allocation1 [shape = 'u32[72,128]{1,0:T(1,128)}', space=vmem, size = 0x9000, scoped, tag = 'internal scratch']
  %s0 = inlined_call_operand.hbm [shape: f32[2,8,32], index: 0, kind: input, shape index: {}]
  %s1 = inlined_call_operand.hbm [shape: f32[2,8,96], index: 1, kind: input, shape index: {}]
  %s2 = inlined_call_operand.vmem [shape: f32[2,32,96], index: 2, kind: input, shape index: {}]
  %s3 = inlined_call_operand.vmem [shape: f32[2,32,32], index: 3, kind: input, shape index: {}]
  %s4 = inlined_call_operand.vmem [shape: f32[2,32,64], index: 4, kind: input, shape index: {}]
  %s5 = inlined_call_operand.vmem [shape: f32[2,64,32], index: 5, kind: input, shape index: {}]
  %s6 = inlined_call_operand.hbm [shape: f32[2,8,32], index: 6, kind: output, shape index: {}]
  %s7 = sld [smem:[#allocation0]]
  $region69: #{tpu_custom_call.1} parent=0
    _
  %s9 = ssub.s32 1, %s7
  %s10 = scalar_select 0, %s9, %s7
  $region1: #{tpu_custom_call.1} parent=0
    #allocation2 [shape = 'u8[8192]{0}', space=vmem, size = 0x2000, scoped, tag = 'input window, operand 0, single buffered']
    #allocation3 [shape = 's32[2]{0}', space=sflag, size = 0x8, scoped, tag = 'scoped memory for tpu_custom_call.1']
    #allocation4 [shape = 's32[2]{0}', space=sflag, size = 0x8, scoped, tag = 'scoped memory for tpu_custom_call.1']
    #allocation5 [shape = 'u8[8192]{0}', space=vmem, size = 0x2000, scoped, tag = 'input window, operand 1']
    #allocation6 [shape = 's32[2]{0}', space=sflag, size = 0x8, scoped, tag = 'scoped memory for tpu_custom_call.1']
    #allocation7 [shape = 'u8[8192]{0}', space=vmem, size = 0x2000, scoped, tag = 'output window, operand 0, single buffered']
    %11 = vsyncpa [#allocation3], 0
    %12 = vsyncpa [#allocation6], 0
    %s13 = scalar_lea.sflag [#allocation6], 1
    %14 = vsyncpa %s13, 0
    %15 = vsyncpa [#allocation4], 0
    loop: start=0, step=1, limit=4
    $region2: #{tpu_custom_call.1} parent=1 // loop_pre_header
      _
    $region3: #{tpu_custom_call.1} parent=1 // loop_header
      %s17 = sphi 0, %s21
      %p18 = scmp.ge.s32.totalorder %s17, 4
      %s24 = sphi 0, %s36
      %s25 = sphi 0, %s32
      %s26 = sphi 0, %s24
      %s27 = sphi 0, %s25
      %s28 = sphi 0, %s26
      %s29 = sphi 0, %s27
      %s39 = sphi 0, %s41
      %s42 = sphi 0, %s39
      %s43 = sphi 0, %s42
      %s59 = sphi 0, %s43
      %s65 = sphi 0, %s67
      %s68 = sphi 0, %s65
      %s69 = sphi 0, %s68
      %s85 = sphi 0, %s69
      %s91 = sphi 0, %s93
      %s94 = sphi 0, %s91
      %s95 = sphi 0, %s94
      %s111 = sphi 0, %s95
      %s117 = sphi 0, %s119
      %s120 = sphi 0, %s117
      %s121 = sphi 0, %s120
      %s137 = sphi 0, %s121
      %s143 = sphi 0, %s145
      %s146 = sphi 0, %s143
      %s147 = sphi 0, %s146
      %s163 = sphi 0, %s147
      %s169 = sphi 0, %s171
      %s172 = sphi 0, %s169
      %s173 = sphi 0, %s172
      %s189 = sphi 0, %s173
      %s195 = sphi 0, %s197
      %s198 = sphi 0, %s195
      %s199 = sphi 0, %s198
      %s215 = sphi 0, %s199
    $region4: #{tpu_custom_call.1} parent=1 // loop_header_branch
      %20 = sbr.rel (%p18) target = $region8
    $region5: #{tpu_custom_call.1} parent=1 // loop_body
      %s22 = ssub.s32 %s17, 1
      %s23 = ssub.s32 %s17, 2
      %s30 = sadd.s32 1, %s25
      %p31 = scmp.ge.s32.totalorder %s30, 2
      %s32 = scalar_select %p31, 0, %s30
      %s33 = sadd.s32 1, %s24
      %s34 = scalar_select %p31, %s33, %s24
      %p35 = scmp.ge.s32.totalorder %s34, 1
      %s36 = scalar_select %p35, 0, %s34
      %s37 = ssub.s32 %s24, %s36
      %p38 = scmp.eq.s32.totalorder %s37, 0
      %s40 = sadd.s32 %s39, 1
      %s41 = scalar_select %p38, %s39, %s40
      %p44 = pneg %p38
      %p45 = scmp.eq.s32.totalorder %s17, 1
      %p46 = por %p44, %p45
      %p47 = scmp.ne.s32.totalorder %s39, %s42
      %p48 = scmp.eq.s32.totalorder %s17, 0
      %p49 = por %p47, %p48
      %p50 = scmp.ne.s32.totalorder %s39, %s42
      %p51 = scmp.eq.s32.totalorder %s22, 1
      %p52 = por %p50, %p51
      %p53 = scmp.ne.s32.totalorder %s42, %s43
      %p54 = scmp.eq.s32.totalorder %s22, 0
      %p55 = por %p53, %p54
      %p56 = scmp.ne.s32.totalorder %s42, %s43
      %p57 = scmp.eq.s32.totalorder %s23, 1
      %p58 = por %p56, %p57
      %p60 = scmp.ne.s32.totalorder %s43, %s59
      %p61 = scmp.eq.s32.totalorder %s23, 0
      %p62 = por %p60, %p61
      %s63 = ssub.s32 %s25, %s32
      %p64 = scmp.eq.s32.totalorder %s63, 0
      %s66 = sadd.s32 %s65, 1
      %s67 = scalar_select %p64, %s65, %s66
      %p70 = pneg %p64
      %p71 = scmp.eq.s32.totalorder %s17, 1
      %p72 = por %p70, %p71
      %p73 = scmp.ne.s32.totalorder %s65, %s68
      %p74 = scmp.eq.s32.totalorder %s17, 0
      %p75 = por %p73, %p74
      %p76 = scmp.ne.s32.totalorder %s65, %s68
      %p77 = scmp.eq.s32.totalorder %s22, 1
      %p78 = por %p76, %p77
      %p79 = scmp.ne.s32.totalorder %s68, %s69
      %p80 = scmp.eq.s32.totalorder %s22, 0
      %p81 = por %p79, %p80
      %p82 = scmp.ne.s32.totalorder %s68, %s69
      %p83 = scmp.eq.s32.totalorder %s23, 1
      %p84 = por %p82, %p83
      %p86 = scmp.ne.s32.totalorder %s69, %s85
      %p87 = scmp.eq.s32.totalorder %s23, 0
      %p88 = por %p86, %p87
      %s89 = ssub.s32 %s25, %s32
      %p90 = scmp.eq.s32.totalorder %s89, 0
      %s92 = sadd.s32 %s91, 1
      %s93 = scalar_select %p90, %s91, %s92
      %p96 = pneg %p90
      %p97 = scmp.eq.s32.totalorder %s17, 1
      %p98 = por %p96, %p97
      %p99 = scmp.ne.s32.totalorder %s91, %s94
      %p100 = scmp.eq.s32.totalorder %s17, 0
      %p101 = por %p99, %p100
      %p102 = scmp.ne.s32.totalorder %s91, %s94
      %p103 = scmp.eq.s32.totalorder %s22, 1
      %p104 = por %p102, %p103
      %p105 = scmp.ne.s32.totalorder %s94, %s95
      %p106 = scmp.eq.s32.totalorder %s22, 0
      %p107 = por %p105, %p106
      %p108 = scmp.ne.s32.totalorder %s94, %s95
      %p109 = scmp.eq.s32.totalorder %s23, 1
      %p110 = por %p108, %p109
      %p112 = scmp.ne.s32.totalorder %s95, %s111
      %p113 = scmp.eq.s32.totalorder %s23, 0
      %p114 = por %p112, %p113
      %s115 = ssub.s32 %s25, %s32
      %p116 = scmp.eq.s32.totalorder %s115, 0
      %s118 = sadd.s32 %s117, 1
      %s119 = scalar_select %p116, %s117, %s118
      %p122 = pneg %p116
      %p123 = scmp.eq.s32.totalorder %s17, 1
      %p124 = por %p122, %p123
      %p125 = scmp.ne.s32.totalorder %s117, %s120
      %p126 = scmp.eq.s32.totalorder %s17, 0
      %p127 = por %p125, %p126
      %p128 = scmp.ne.s32.totalorder %s117, %s120
      %p129 = scmp.eq.s32.totalorder %s22, 1
      %p130 = por %p128, %p129
      %p131 = scmp.ne.s32.totalorder %s120, %s121
      %p132 = scmp.eq.s32.totalorder %s22, 0
      %p133 = por %p131, %p132
      %p134 = scmp.ne.s32.totalorder %s120, %s121
      %p135 = scmp.eq.s32.totalorder %s23, 1
      %p136 = por %p134, %p135
      %p138 = scmp.ne.s32.totalorder %s121, %s137
      %p139 = scmp.eq.s32.totalorder %s23, 0
      %p140 = por %p138, %p139
      %s141 = ssub.s32 %s25, %s32
      %p142 = scmp.eq.s32.totalorder %s141, 0
      %s144 = sadd.s32 %s143, 1
      %s145 = scalar_select %p142, %s143, %s144
      %p148 = pneg %p142
      %p149 = scmp.eq.s32.totalorder %s17, 1
      %p150 = por %p148, %p149
      %p151 = scmp.ne.s32.totalorder %s143, %s146
      %p152 = scmp.eq.s32.totalorder %s17, 0
      %p153 = por %p151, %p152
      %p154 = scmp.ne.s32.totalorder %s143, %s146
      %p155 = scmp.eq.s32.totalorder %s22, 1
      %p156 = por %p154, %p155
      %p157 = scmp.ne.s32.totalorder %s146, %s147
      %p158 = scmp.eq.s32.totalorder %s22, 0
      %p159 = por %p157, %p158
      %p160 = scmp.ne.s32.totalorder %s146, %s147
      %p161 = scmp.eq.s32.totalorder %s23, 1
      %p162 = por %p160, %p161
      %p164 = scmp.ne.s32.totalorder %s147, %s163
      %p165 = scmp.eq.s32.totalorder %s23, 0
      %p166 = por %p164, %p165
      %s167 = ssub.s32 %s25, %s32
      %p168 = scmp.eq.s32.totalorder %s167, 0
      %s170 = sadd.s32 %s169, 1
      %s171 = scalar_select %p168, %s169, %s170
      %p174 = pneg %p168
      %p175 = scmp.eq.s32.totalorder %s17, 1
      %p176 = por %p174, %p175
      %p177 = scmp.ne.s32.totalorder %s169, %s172
      %p178 = scmp.eq.s32.totalorder %s17, 0
      %p179 = por %p177, %p178
      %p180 = scmp.ne.s32.totalorder %s169, %s172
      %p181 = scmp.eq.s32.totalorder %s22, 1
      %p182 = por %p180, %p181
      %p183 = scmp.ne.s32.totalorder %s172, %s173
      %p184 = scmp.eq.s32.totalorder %s22, 0
      %p185 = por %p183, %p184
      %p186 = scmp.ne.s32.totalorder %s172, %s173
      %p187 = scmp.eq.s32.totalorder %s23, 1
      %p188 = por %p186, %p187
      %p190 = scmp.ne.s32.totalorder %s173, %s189
      %p191 = scmp.eq.s32.totalorder %s23, 0
      %p192 = por %p190, %p191
      %s193 = ssub.s32 %s24, %s36
      %p194 = scmp.eq.s32.totalorder %s193, 0
      %s196 = sadd.s32 %s195, 1
      %s197 = scalar_select %p194, %s195, %s196
      %p200 = pneg %p194
      %p201 = scmp.eq.s32.totalorder %s17, 1
      %p202 = por %p200, %p201
      %p203 = scmp.ne.s32.totalorder %s195, %s198
      %p204 = scmp.eq.s32.totalorder %s17, 0
      %p205 = por %p203, %p204
      %p206 = scmp.ne.s32.totalorder %s195, %s198
      %p207 = scmp.eq.s32.totalorder %s22, 1
      %p208 = por %p206, %p207
      %p209 = scmp.ne.s32.totalorder %s198, %s199
      %p210 = scmp.eq.s32.totalorder %s22, 0
      %p211 = por %p209, %p210
      %p212 = scmp.ne.s32.totalorder %s198, %s199
      %p213 = scmp.eq.s32.totalorder %s23, 1
      %p214 = por %p212, %p213
      %p216 = scmp.ne.s32.totalorder %s199, %s215
      %p217 = scmp.eq.s32.totalorder %s23, 0
      %p218 = por %p216, %p217
      %p219 = scmp.le.s32.totalorder 1, %s17
      %p220 = scmp.lt.s32.totalorder %s17, 3
      %p221 = pnand %p219, %p220
      %p222 = pneg %p221
      // Predicated region
      $region9: #{tpu_custom_call.1} parent=5 // pred_check
        _
      $region10: #{tpu_custom_call.1} parent=5 // pred_check_branch
        %224 = sbr.rel (%p221) target = $region12
      $region11: #{tpu_custom_call.1} parent=5 // pred_region
        %s225 = ssub.s32 %s17, 1
        // Predicated region
        $region13: #{tpu_custom_call.1} parent=11 // pred_check
          %p226 = pneg %p55
        $region14: #{tpu_custom_call.1} parent=11 // pred_check_branch
          %228 = sbr.rel (%p226) target = $region16
        $region15: #{tpu_custom_call.1} parent=11 // pred_region
          %s229 = smul.u32 2, %s26
          %231 = vsyncadd [#allocation3], 0
          %s232 = smul.addr %s229, 8
          %s233 = scalar_lea.hbm %s0, %s232
          %s234 = sshll.u32 %s233, 4
          %s235 = int_to_ptr.hbm [resolvable:$true] %s234
          %s236 = sshll.u32 [#allocation2], 4
          %s237 = int_to_ptr.vmem [resolvable:$true] %s236
          %242 = dma.hbm_to_vmem [thread:$0]  %s235, 256, %s237, [#allocation3], 128, 128, 8
        $region16: #{tpu_custom_call.1} parent=11 // pred_fallthru
          _
      $region12: #{tpu_custom_call.1} parent=5 // pred_fallthru
        _
      %p243 = scmp.lt.s32.totalorder %s17, 2
      // Predicated region
      $region17: #{tpu_custom_call.1} parent=5 // pred_check
        %p244 = pneg %p243
      $region18: #{tpu_custom_call.1} parent=5 // pred_check_branch
        %246 = sbr.rel (%p244) target = $region20
      $region19: #{tpu_custom_call.1} parent=5 // pred_region
        // Predicated region
        $region21: #{tpu_custom_call.1} parent=19 // pred_check
          %p247 = pneg %p75
        $region22: #{tpu_custom_call.1} parent=19 // pred_check_branch
          %249 = sbr.rel (%p247) target = $region24
        $region23: #{tpu_custom_call.1} parent=19 // pred_region
          %s250 = sand.u32 %s65, 1
          %s251 = scalar_lea.sflag [#allocation6], %s250
          %s252 = sand.u32 %s65, 1
          %s253 = smul.addr %s252, 8
          %s254 = scalar_lea.vmem [#allocation5], %s253
          %256 = vsyncadd %s251, 0
          %s257 = smul.addr %s25, 8
          %s258 = scalar_lea.hbm %s1, %s257
          %s260 = sshll.u32 %s258, 4
          %s261 = int_to_ptr.hbm [resolvable:$true] %s260
          %s262 = sshll.u32 %s254, 4
          %s263 = int_to_ptr.vmem [resolvable:$true] %s262
          %265 = dma.hbm_to_vmem [thread:$0]  %s261, 128, %s263, %s251
        $region24: #{tpu_custom_call.1} parent=19 // pred_fallthru
          _
        // Predicated region
        $region25: #{tpu_custom_call.1} parent=19 // pred_check
          %p266 = pneg %p101
        $region26: #{tpu_custom_call.1} parent=19 // pred_check_branch
          %268 = sbr.rel (%p266) target = $region28
        $region27: #{tpu_custom_call.1} parent=19 // pred_region
          %p269 = scmp.lt.s32.totalorder %s25, 1
          %s270 = scalar_select %p269, %s25, 1
          %s271 = smul.addr %s270, 4
          %s272 = smul.addr %s271, 8
          %s273 = scalar_lea.vmem %s2, %s272
        $region28: #{tpu_custom_call.1} parent=19 // pred_fallthru
          _
        // Predicated region
        $region29: #{tpu_custom_call.1} parent=19 // pred_check
          %p274 = pneg %p127
        $region30: #{tpu_custom_call.1} parent=19 // pred_check_branch
          %276 = sbr.rel (%p274) target = $region32
        $region31: #{tpu_custom_call.1} parent=19 // pred_region
          %p277 = scmp.lt.s32.totalorder %s25, 1
          %s278 = scalar_select %p277, %s25, 1
          %s279 = smul.addr %s278, 4
          %s280 = smul.addr %s279, 8
          %s281 = scalar_lea.vmem %s3, %s280
        $region32: #{tpu_custom_call.1} parent=19 // pred_fallthru
          _
        // Predicated region
        $region33: #{tpu_custom_call.1} parent=19 // pred_check
          %p282 = pneg %p153
        $region34: #{tpu_custom_call.1} parent=19 // pred_check_branch
          %284 = sbr.rel (%p282) target = $region36
        $region35: #{tpu_custom_call.1} parent=19 // pred_region
          %p285 = scmp.lt.s32.totalorder %s25, 1
          %s286 = scalar_select %p285, %s25, 1
          %s287 = smul.addr %s286, 4
          %s288 = smul.addr %s287, 8
          %s289 = scalar_lea.vmem %s4, %s288
        $region36: #{tpu_custom_call.1} parent=19 // pred_fallthru
          _
        // Predicated region
        $region37: #{tpu_custom_call.1} parent=19 // pred_check
          %p290 = pneg %p179
        $region38: #{tpu_custom_call.1} parent=19 // pred_check_branch
          %292 = sbr.rel (%p290) target = $region40
        $region39: #{tpu_custom_call.1} parent=19 // pred_region
          %p293 = scmp.lt.s32.totalorder %s25, 1
          %s294 = scalar_select %p293, %s25, 1
          %s295 = smul.addr %s294, 8
          %s296 = smul.addr %s295, 8
          %s297 = scalar_lea.vmem %s5, %s296
        $region40: #{tpu_custom_call.1} parent=19 // pred_fallthru
          _
      $region20: #{tpu_custom_call.1} parent=5 // pred_fallthru
        _
      %p298 = scmp.le.s32.totalorder 1, %s17
      %p299 = scmp.lt.s32.totalorder %s17, 3
      %p300 = pnand %p298, %p299
      %p301 = pneg %p300
      // Predicated region
      $region41: #{tpu_custom_call.1} parent=5 // pred_check
        _
      $region42: #{tpu_custom_call.1} parent=5 // pred_check_branch
        %303 = sbr.rel (%p300) target = $region44
      $region43: #{tpu_custom_call.1} parent=5 // pred_region
        %s304 = ssub.s32 %s17, 1
        // Predicated region
        $region45: #{tpu_custom_call.1} parent=43 // pred_check
          %p305 = pneg %p55
        $region46: #{tpu_custom_call.1} parent=43 // pred_check_branch
          %307 = sbr.rel (%p305) target = $region48
        $region47: #{tpu_custom_call.1} parent=43 // pred_region
          %309 = dma.done [#allocation3], 256
        $region48: #{tpu_custom_call.1} parent=43 // pred_fallthru
          _
        %s310 = sand.u32 %s68, 1
        %s311 = scalar_lea.sflag [#allocation6], %s310
        %s312 = sand.u32 %s68, 1
        %s313 = smul.addr %s312, 8
        %s314 = scalar_lea.vmem [#allocation5], %s313
        // Predicated region
        $region49: #{tpu_custom_call.1} parent=43 // pred_check
          %p315 = pneg %p81
        $region50: #{tpu_custom_call.1} parent=43 // pred_check_branch
          %317 = sbr.rel (%p315) target = $region52
        $region51: #{tpu_custom_call.1} parent=43 // pred_region
          %319 = dma.done %s311, 128
        $region52: #{tpu_custom_call.1} parent=43 // pred_fallthru
          _
        %p320 = pneg %p55
        %p321 = pneg %p52
        %s322 = sand.u32 %s68, 1
        %s323 = scalar_lea.sflag [#allocation6], %s322
        %s324 = sand.u32 %s68, 1
        %s325 = smul.addr %s324, 8
        %s326 = scalar_lea.vmem [#allocation5], %s325
        %p327 = pneg %p81
        %p328 = pneg %p78
        %p329 = scmp.lt.s32.totalorder %s27, 1
        %s330 = scalar_select %p329, %s27, 1
        %s331 = smul.addr %s330, 4
        %s332 = smul.addr %s331, 8
        %s333 = scalar_lea.vmem %s2, %s332
        %p334 = pneg %p107
        %p335 = pneg %p104
        %p336 = scmp.lt.s32.totalorder %s27, 1
        %s337 = scalar_select %p336, %s27, 1
        %s338 = smul.addr %s337, 4
        %s339 = smul.addr %s338, 8
        %s340 = scalar_lea.vmem %s3, %s339
        %p341 = pneg %p133
        %p342 = pneg %p130
        %p343 = scmp.lt.s32.totalorder %s27, 1
        %s344 = scalar_select %p343, %s27, 1
        %s345 = smul.addr %s344, 4
        %s346 = smul.addr %s345, 8
        %s347 = scalar_lea.vmem %s4, %s346
        %p348 = pneg %p159
        %p349 = pneg %p156
        %p350 = scmp.lt.s32.totalorder %s27, 1
        %s351 = scalar_select %p350, %s27, 1
        %s352 = smul.addr %s351, 8
        %s353 = smul.addr %s352, 8
        %s354 = scalar_lea.vmem %s5, %s353
        %p355 = pneg %p185
        %p356 = pneg %p182
        %p357 = pneg %p211
        %p358 = pneg %p208
        %s359 = smul.u32 2, %s26
        %p360 = scmp.lt.s32.totalorder %s27, 1
        %s361 = scalar_select %p360, %s27, 1
        %s362 = smul.addr %s361, 4
        %s363 = smul.addr %s362, 8
        %s364 = scalar_lea.vmem %s2, %s363
        %p365 = scmp.lt.s32.totalorder %s27, 1
        %s366 = scalar_select %p365, %s27, 1
        %s367 = smul.addr %s366, 4
        %s368 = smul.addr %s367, 8
        %s369 = scalar_lea.vmem %s3, %s368
        %p370 = scmp.lt.s32.totalorder %s27, 1
        %s371 = scalar_select %p370, %s27, 1
        %s372 = smul.addr %s371, 4
        %s373 = smul.addr %s372, 8
        %s374 = scalar_lea.vmem %s4, %s373
        %p375 = scmp.lt.s32.totalorder %s27, 1
        %s376 = scalar_select %p375, %s27, 1
        %s377 = smul.addr %s376, 8
        %s378 = smul.addr %s377, 8
        %s379 = scalar_lea.vmem %s5, %s378
        %s380 = smul.u32 2, %s26
        %p381 = scmp.eq.s32.totalorder %s27, 0
        // Predicated region
        $region53: #{tpu_custom_call.1} parent=43 // pred_check
          %p382 = pneg %p381
        $region54: #{tpu_custom_call.1} parent=43 // pred_check_branch
          %384 = sbr.rel (%p382) target = $region56
        $region55: #{tpu_custom_call.1} parent=43 // pred_region
          %v385 = vld [vmem:[#allocation2] sm:$0xff]
          %v386 = vld [vmem:[#allocation2 + $0x8] sm:$0xff]
          %vm387 = vcmask 261120
          %388 = vst.msk [vmem:[#allocation7] sm:$0xff] %vm387, %v385
          %389 = vst.msk [vmem:[#allocation7 + $0x8] sm:$0xff] %vm387, %v386
        $region56: #{tpu_custom_call.1} parent=43 // pred_fallthru
          _
        %v390 = vld [vmem:[%s314] sm:$0xff]
        %v391 = vld [vmem:[#allocation7] sm:$0xff]
        %v392 = vld [vmem:[#allocation7 + $0x8] sm:$0xff]
        %vm393 = vcmask 261120
        %v394 = vsel %vm393, %v391, 0.0
        %395 = vadd.xlane.f32.xlu0 %v394
        %v396 = vpop.xlane.xlu0 %395
        %v397 = vsel %vm393, %v392, 0.0
        %398 = vadd.xlane.f32.xlu0 %v397
        %v399 = vpop.xlane.xlu0 %398
        %v400 = vrcp.pop 32.0
        %v401 = vmul.f32 32.0, %v400
        %v402 = vsub.f32 1.0, %v401
        %v403 = vmul.f32 %v400, %v402
        %v404 = vadd.f32 %v400, %v403
        %vm405 = vweird.f32 %v400
        %v406 = vsel %vm405, %v400, %v404
        %v407 = vmul.f32 %v396, %v406
        %v408 = vmul.f32 %v399, %v406
        %v409 = vsub.f32 %v391, %v407
        %v410 = vsub.f32 %v392, %v408
        %v411 = vmul.f32 %v409, %v409
        %v412 = vmul.f32 %v410, %v410
        %v413 = vsel %vm393, %v411, 0.0
        %414 = vadd.xlane.f32.xlu0 %v413
        %v415 = vpop.xlane.xlu0 %414
        %v416 = vsel %vm393, %v412, 0.0
        %417 = vadd.xlane.f32.xlu0 %v416
        %v418 = vpop.xlane.xlu0 %417
        %v419 = vmul.f32 %v415, %v406
        %v420 = vmul.f32 %v418, %v406
        %v421 = vadd.f32 %v419, 1e-05
        %v422 = vadd.f32 %v420, 1e-05
        %v423 = vrsqrt.pop %v421
        %v424 = vmul.f32 %v423, %v421
        %v425 = vmul.f32 %v424, %v423
        %v426 = vmul.f32 0.5, %v425
        %v427 = vsub.f32 1.5, %v426
        %v428 = vmul.f32 %v423, %v427
        %vm429 = vweird.f32 %v421
        %vm430 = vweird.f32 %v423
        %vm431 = vmor %vm429, %vm430
        %v432 = vsel %vm431, %v423, %v428
        %v433 = vrsqrt.pop %v422
        %v434 = vmul.f32 %v433, %v422
        %v435 = vmul.f32 %v434, %v433
        %v436 = vmul.f32 0.5, %v435
        %v437 = vsub.f32 1.5, %v436
        %v438 = vmul.f32 %v433, %v437
        %vm439 = vweird.f32 %v422
        %vm440 = vweird.f32 %v433
        %vm441 = vmor %vm439, %vm440
        %v442 = vsel %vm441, %v433, %v438
        %v443 = vmul.f32 %v409, %v432
        %v444 = vmul.f32 %v410, %v442
        %v445 = vperm.slane %v390, 0
        %v446 = vmul.f32 %v443, %v445
        %v447 = vmul.f32 %v444, %v445
        %v448 = vperm.slane %v390, 1
        %v449 = vadd.f32 %v446, %v448
        %v450 = vadd.f32 %v447, %v448
        %v451 = vld [vmem:[%s364] sm:$0xff]
        %v452 = vld [vmem:[%s364 + $0x8] sm:$0xff]
        %v453 = vld [vmem:[%s364 + $0x10] sm:$0xff]
        %v454 = vld [vmem:[%s364 + $0x18] sm:$0xff]
        %v455 = vperm.slane %v390, 7
        %v457 = vsel %vm393, %v449, 0
        %v460 = vsel %vm393, %v450, 0
        %462 = vmatpush.msra.mxu0 0.0
        %463 = vmatpush.msra.mxu0 0.0
        %464 = vmatpush.msra.mxu0 0.0
        %465 = vmatpush.msra.mxu0 0.0
        %466 = vmatpush.msra.mxu0 0.0
        %467 = vmatpush.msra.mxu0 0.0
        %468 = vmatpush.msra.mxu0 0.0
        %469 = vmatpush.msra.mxu0 0.0
        %470 = vmatpush.msra.mxu0 0.0
        %471 = vmatpush.msra.mxu0 0.0
        %472 = vmatpush.msra.mxu0 0.0
        %473 = vmatpush.msra.mxu0 0.0
        %474 = vmatpush.msra.mxu0 %v454
        %475 = vmatpush.msra.mxu0 %v453
        %476 = vmatpush.msra.mxu0 %v452
        %477 = vmatpush.msra.mxu0 %v451
        %478 = vmatmul.f32.gmra.mxu0 %v457
        %v479 = vpop.f32.mrf.mxu0
        %v480 = vadd.f32 %v455, %v479
        %481 = vmatmul.f32.gmra.mxu0 %v460
        %v482 = vpop.f32.mrf.mxu0
        %v483 = vadd.f32 %v455, %v482
        %484 = vdwg.mxu0
        %487 = vrot.lane.b32.xlu0 %v480, 120
        %v488 = vpop.permute.xlu0 %487
        %489 = vrot.lane.b32.xlu0 %v483, 120
        %v490 = vpop.permute.xlu0 %489
        %491 = vrot.lane.b32.xlu0 %v480, 112
        %v492 = vpop.permute.xlu0 %491
        %493 = vrot.lane.b32.xlu0 %v483, 112
        %v494 = vpop.permute.xlu0 %493
        %495 = vrot.lane.b32.xlu0 %v480, 104
        %v496 = vpop.permute.xlu0 %495
        %497 = vrot.lane.b32.xlu0 %v483, 104
        %v498 = vpop.permute.xlu0 %497
        %499 = vrot.lane.b32.xlu0 %v480, 96
        %v500 = vpop.permute.xlu0 %499
        %vm501 = vcmask 64512
        %v502 = vsel %vm501, %v480, 0
        %v504 = vsel %vm501, %v500, 0
        %506 = vmatpush.xpose.msra.mxu0 0.0
        %507 = vmatpush.xpose.msra.mxu0 0.0
        %508 = vmatpush.xpose.msra.mxu0 0.0
        %509 = vmatpush.xpose.msra.mxu0 0.0
        %510 = vmatpush.xpose.msra.mxu0 0.0
        %511 = vmatpush.xpose.msra.mxu0 0.0
        %512 = vmatpush.xpose.msra.mxu0 0.0
        %513 = vmatpush.xpose.msra.mxu0 0.0
        %514 = vmatpush.xpose.msra.mxu0 0.0
        %515 = vmatpush.xpose.msra.mxu0 0.0
        %516 = vmatpush.xpose.msra.mxu0 0.0
        %517 = vmatpush.xpose.msra.mxu0 0.0
        %518 = vmatpush.xpose.msra.mxu0 0.0
        %519 = vmatpush.xpose.msra.mxu0 0.0
        %520 = vmatpush.xpose.msra.mxu0 0.0
        %521 = vmatpush.xpose.msra.mxu0 %v504
        %522 = vmatmul.f32.gmra.mxu0 %v502
        %v523 = vpop.f32.mrf.mxu0
        %v524 = vadd.f32 0.0, %v523
        %525 = vdwg.mxu0
        %526 = vrot.lane.b32.xlu0 %v483, 96
        %v527 = vpop.permute.xlu0 %526
        %v528 = vsel %vm501, %v483, 0
        %v530 = vsel %vm501, %v527, 0
        %532 = vmatpush.xpose.msra.mxu0 0.0
        %533 = vmatpush.xpose.msra.mxu0 0.0
        %534 = vmatpush.xpose.msra.mxu0 0.0
        %535 = vmatpush.xpose.msra.mxu0 0.0
        %536 = vmatpush.xpose.msra.mxu0 0.0
        %537 = vmatpush.xpose.msra.mxu0 0.0
        %538 = vmatpush.xpose.msra.mxu0 0.0
        %539 = vmatpush.xpose.msra.mxu0 0.0
        %540 = vmatpush.xpose.msra.mxu0 0.0
        %541 = vmatpush.xpose.msra.mxu0 0.0
        %542 = vmatpush.xpose.msra.mxu0 0.0
        %543 = vmatpush.xpose.msra.mxu0 0.0
        %544 = vmatpush.xpose.msra.mxu0 0.0
        %545 = vmatpush.xpose.msra.mxu0 0.0
        %546 = vmatpush.xpose.msra.mxu0 0.0
        %547 = vmatpush.xpose.msra.mxu0 %v530
        %548 = vmatmul.f32.gmra.mxu0 %v528
        %v549 = vpop.f32.mrf.mxu0
        %v550 = vadd.f32 0.0, %v549
        %551 = vdwg.mxu0
        %552 = vrot.lane.b32.xlu0 %v488, 96
        %v553 = vpop.permute.xlu0 %552
        %v554 = vsel %vm501, %v488, 0
        %v556 = vsel %vm501, %v553, 0
        %558 = vmatpush.xpose.msra.mxu0 0.0
        %559 = vmatpush.xpose.msra.mxu0 0.0
        %560 = vmatpush.xpose.msra.mxu0 0.0
        %561 = vmatpush.xpose.msra.mxu0 0.0
        %562 = vmatpush.xpose.msra.mxu0 0.0
        %563 = vmatpush.xpose.msra.mxu0 0.0
        %564 = vmatpush.xpose.msra.mxu0 0.0
        %565 = vmatpush.xpose.msra.mxu0 0.0
        %566 = vmatpush.xpose.msra.mxu0 0.0
        %567 = vmatpush.xpose.msra.mxu0 0.0
        %568 = vmatpush.xpose.msra.mxu0 0.0
        %569 = vmatpush.xpose.msra.mxu0 0.0
        %570 = vmatpush.xpose.msra.mxu0 0.0
        %571 = vmatpush.xpose.msra.mxu0 0.0
        %572 = vmatpush.xpose.msra.mxu0 0.0
        %573 = vmatpush.xpose.msra.mxu0 %v556
        %574 = vmatmul.f32.gmra.mxu0 %v554
        %v575 = vpop.f32.mrf.mxu0
        %v576 = vadd.f32 0.0, %v575
        %577 = vdwg.mxu0
        %578 = vrot.lane.b32.xlu0 %v490, 96
        %v579 = vpop.permute.xlu0 %578
        %v580 = vsel %vm501, %v490, 0
        %v582 = vsel %vm501, %v579, 0
        %584 = vmatpush.xpose.msra.mxu0 0.0
        %585 = vmatpush.xpose.msra.mxu0 0.0
        %586 = vmatpush.xpose.msra.mxu0 0.0
        %587 = vmatpush.xpose.msra.mxu0 0.0
        %588 = vmatpush.xpose.msra.mxu0 0.0
        %589 = vmatpush.xpose.msra.mxu0 0.0
        %590 = vmatpush.xpose.msra.mxu0 0.0
        %591 = vmatpush.xpose.msra.mxu0 0.0
        %592 = vmatpush.xpose.msra.mxu0 0.0
        %593 = vmatpush.xpose.msra.mxu0 0.0
        %594 = vmatpush.xpose.msra.mxu0 0.0
        %595 = vmatpush.xpose.msra.mxu0 0.0
        %596 = vmatpush.xpose.msra.mxu0 0.0
        %597 = vmatpush.xpose.msra.mxu0 0.0
        %598 = vmatpush.xpose.msra.mxu0 0.0
        %599 = vmatpush.xpose.msra.mxu0 %v582
        %600 = vmatmul.f32.gmra.mxu0 %v580
        %v601 = vpop.f32.mrf.mxu0
        %v602 = vadd.f32 0.0, %v601
        %603 = vdwg.mxu0
        %604 = vrot.lane.b32.xlu0 %v492, 96
        %v605 = vpop.permute.xlu0 %604
        %v606 = vsel %vm501, %v492, 0
        %v608 = vsel %vm501, %v605, 0
        %610 = vmatpush.xpose.msra.mxu0 0.0
        %611 = vmatpush.xpose.msra.mxu0 0.0
        %612 = vmatpush.xpose.msra.mxu0 0.0
        %613 = vmatpush.xpose.msra.mxu0 0.0
        %614 = vmatpush.xpose.msra.mxu0 0.0
        %615 = vmatpush.xpose.msra.mxu0 0.0
        %616 = vmatpush.xpose.msra.mxu0 0.0
        %617 = vmatpush.xpose.msra.mxu0 0.0
        %618 = vmatpush.xpose.msra.mxu0 0.0
        %619 = vmatpush.xpose.msra.mxu0 0.0
        %620 = vmatpush.xpose.msra.mxu0 0.0
        %621 = vmatpush.xpose.msra.mxu0 0.0
        %622 = vmatpush.xpose.msra.mxu0 0.0
        %623 = vmatpush.xpose.msra.mxu0 0.0
        %624 = vmatpush.xpose.msra.mxu0 0.0
        %625 = vmatpush.xpose.msra.mxu0 %v608
        %626 = vmatmul.f32.gmra.mxu0 %v606
        %v627 = vpop.f32.mrf.mxu0
        %v628 = vadd.f32 0.0, %v627
        %629 = vdwg.mxu0
        %630 = vrot.lane.b32.xlu0 %v494, 96
        %v631 = vpop.permute.xlu0 %630
        %v632 = vsel %vm501, %v494, 0
        %v634 = vsel %vm501, %v631, 0
        %636 = vmatpush.xpose.msra.mxu0 0.0
        %637 = vmatpush.xpose.msra.mxu0 0.0
        %638 = vmatpush.xpose.msra.mxu0 0.0
        %639 = vmatpush.xpose.msra.mxu0 0.0
        %640 = vmatpush.xpose.msra.mxu0 0.0
        %641 = vmatpush.xpose.msra.mxu0 0.0
        %642 = vmatpush.xpose.msra.mxu0 0.0
        %643 = vmatpush.xpose.msra.mxu0 0.0
        %644 = vmatpush.xpose.msra.mxu0 0.0
        %645 = vmatpush.xpose.msra.mxu0 0.0
        %646 = vmatpush.xpose.msra.mxu0 0.0
        %647 = vmatpush.xpose.msra.mxu0 0.0
        %648 = vmatpush.xpose.msra.mxu0 0.0
        %649 = vmatpush.xpose.msra.mxu0 0.0
        %650 = vmatpush.xpose.msra.mxu0 0.0
        %651 = vmatpush.xpose.msra.mxu0 %v634
        %652 = vmatmul.f32.gmra.mxu0 %v632
        %v653 = vpop.f32.mrf.mxu0
        %v654 = vadd.f32 0.0, %v653
        %655 = vdwg.mxu0
        %656 = vrot.lane.b32.xlu0 %v496, 96
        %v657 = vpop.permute.xlu0 %656
        %v658 = vsel %vm501, %v496, 0
        %v660 = vsel %vm501, %v657, 0
        %662 = vmatpush.xpose.msra.mxu0 0.0
        %663 = vmatpush.xpose.msra.mxu0 0.0
        %664 = vmatpush.xpose.msra.mxu0 0.0
        %665 = vmatpush.xpose.msra.mxu0 0.0
        %666 = vmatpush.xpose.msra.mxu0 0.0
        %667 = vmatpush.xpose.msra.mxu0 0.0
        %668 = vmatpush.xpose.msra.mxu0 0.0
        %669 = vmatpush.xpose.msra.mxu0 0.0
        %670 = vmatpush.xpose.msra.mxu0 0.0
        %671 = vmatpush.xpose.msra.mxu0 0.0
        %672 = vmatpush.xpose.msra.mxu0 0.0
        %673 = vmatpush.xpose.msra.mxu0 0.0
        %674 = vmatpush.xpose.msra.mxu0 0.0
        %675 = vmatpush.xpose.msra.mxu0 0.0
        %676 = vmatpush.xpose.msra.mxu0 0.0
        %677 = vmatpush.xpose.msra.mxu0 %v660
        %678 = vmatmul.f32.gmra.mxu0 %v658
        %v679 = vpop.f32.mrf.mxu0
        %v680 = vadd.f32 0.0, %v679
        %681 = vdwg.mxu0
        %682 = vrot.lane.b32.xlu0 %v498, 96
        %v683 = vpop.permute.xlu0 %682
        %v684 = vsel %vm501, %v498, 0
        %v686 = vsel %vm501, %v683, 0
        %688 = vmatpush.xpose.msra.mxu0 0.0
        %689 = vmatpush.xpose.msra.mxu0 0.0
        %690 = vmatpush.xpose.msra.mxu0 0.0
        %691 = vmatpush.xpose.msra.mxu0 0.0
        %692 = vmatpush.xpose.msra.mxu0 0.0
        %693 = vmatpush.xpose.msra.mxu0 0.0
        %694 = vmatpush.xpose.msra.mxu0 0.0
        %695 = vmatpush.xpose.msra.mxu0 0.0
        %696 = vmatpush.xpose.msra.mxu0 0.0
        %697 = vmatpush.xpose.msra.mxu0 0.0
        %698 = vmatpush.xpose.msra.mxu0 0.0
        %699 = vmatpush.xpose.msra.mxu0 0.0
        %700 = vmatpush.xpose.msra.mxu0 0.0
        %701 = vmatpush.xpose.msra.mxu0 0.0
        %702 = vmatpush.xpose.msra.mxu0 0.0
        %703 = vmatpush.xpose.msra.mxu0 %v686
        %704 = vmatmul.f32.gmra.mxu0 %v684
        %v705 = vpop.f32.mrf.mxu0
        %v706 = vadd.f32 0.0, %v705
        %707 = vdwg.mxu0
        %v708 = vsel %vm501, %v524, -inf
        %709 = vmax.xlane.f32.xlu0 %v708
        %v710 = vpop.xlane.xlu0 %709
        %v711 = vsel %vm501, %v550, -inf
        %712 = vmax.xlane.f32.xlu0 %v711
        %v713 = vpop.xlane.xlu0 %712
        %v714 = vsel %vm501, %v576, -inf
        %715 = vmax.xlane.f32.xlu0 %v714
        %v716 = vpop.xlane.xlu0 %715
        %v717 = vsel %vm501, %v602, -inf
        %718 = vmax.xlane.f32.xlu0 %v717
        %v719 = vpop.xlane.xlu0 %718
        %v720 = vsel %vm501, %v628, -inf
        %721 = vmax.xlane.f32.xlu0 %v720
        %v722 = vpop.xlane.xlu0 %721
        %v723 = vsel %vm501, %v654, -inf
        %724 = vmax.xlane.f32.xlu0 %v723
        %v725 = vpop.xlane.xlu0 %724
        %v726 = vsel %vm501, %v680, -inf
        %727 = vmax.xlane.f32.xlu0 %v726
        %v728 = vpop.xlane.xlu0 %727
        %v729 = vsel %vm501, %v706, -inf
        %730 = vmax.xlane.f32.xlu0 %v729
        %v731 = vpop.xlane.xlu0 %730
        %v732 = vsub.f32 %v524, %v710
        %v733 = vsub.f32 %v550, %v713
        %v734 = vsub.f32 %v576, %v716
        %v735 = vsub.f32 %v602, %v719
        %v736 = vsub.f32 %v628, %v722
        %v737 = vsub.f32 %v654, %v725
        %v738 = vsub.f32 %v680, %v728
        %v739 = vsub.f32 %v706, %v731
        %v740 = vmul.f32 %v732, 1.442695
        %v741 = vpow.pop %v740
        %v742 = vmul.f32 %v733, 1.442695
        %v743 = vpow.pop %v742
        %v744 = vmul.f32 %v734, 1.442695
        %v745 = vpow.pop %v744
        %v746 = vmul.f32 %v735, 1.442695
        %v747 = vpow.pop %v746
        %v748 = vmul.f32 %v736, 1.442695
        %v749 = vpow.pop %v748
        %v750 = vmul.f32 %v737, 1.442695
        %v751 = vpow.pop %v750
        %v752 = vmul.f32 %v738, 1.442695
        %v753 = vpow.pop %v752
        %v754 = vmul.f32 %v739, 1.442695
        %v755 = vpow.pop %v754
        %v756 = vsel %vm501, %v741, 0.0
        %757 = vadd.xlane.f32.xlu0 %v756
        %v758 = vpop.xlane.xlu0 %757
        %v759 = vsel %vm501, %v743, 0.0
        %760 = vadd.xlane.f32.xlu0 %v759
        %v761 = vpop.xlane.xlu0 %760
        %v762 = vsel %vm501, %v745, 0.0
        %763 = vadd.xlane.f32.xlu0 %v762
        %v764 = vpop.xlane.xlu0 %763
        %v765 = vsel %vm501, %v747, 0.0
        %766 = vadd.xlane.f32.xlu0 %v765
        %v767 = vpop.xlane.xlu0 %766
        %v768 = vsel %vm501, %v749, 0.0
        %769 = vadd.xlane.f32.xlu0 %v768
        %v770 = vpop.xlane.xlu0 %769
        %v771 = vsel %vm501, %v751, 0.0
        %772 = vadd.xlane.f32.xlu0 %v771
        %v773 = vpop.xlane.xlu0 %772
        %v774 = vsel %vm501, %v753, 0.0
        %775 = vadd.xlane.f32.xlu0 %v774
        %v776 = vpop.xlane.xlu0 %775
        %v777 = vsel %vm501, %v755, 0.0
        %778 = vadd.xlane.f32.xlu0 %v777
        %v779 = vpop.xlane.xlu0 %778
        %780 = vrot.lane.b32.xlu0 %v480, 64
        %v781 = vpop.permute.xlu0 %780
        %v784 = vsel %vm501, %v741, 0
        %786 = vmatpush.msra.mxu0 0.0
        %787 = vmatpush.msra.mxu0 0.0
        %788 = vmatpush.msra.mxu0 0.0
        %789 = vmatpush.msra.mxu0 0.0
        %790 = vmatpush.msra.mxu0 0.0
        %791 = vmatpush.msra.mxu0 0.0
        %792 = vmatpush.msra.mxu0 0.0
        %793 = vmatpush.msra.mxu0 0.0
        %794 = vmatpush.msra.mxu0 0.0
        %795 = vmatpush.msra.mxu0 0.0
        %796 = vmatpush.msra.mxu0 0.0
        %797 = vmatpush.msra.mxu0 0.0
        %798 = vmatpush.msra.mxu0 0.0
        %799 = vmatpush.msra.mxu0 0.0
        %800 = vmatpush.msra.mxu0 0.0
        %801 = vmatpush.msra.mxu0 %v781
        %802 = vmatmul.f32.gmra.mxu0 %v784
        %v803 = vpop.f32.mrf.mxu0
        %v804 = vadd.f32 0.0, %v803
        %805 = vdwg.mxu0
        %806 = vrot.lane.b32.xlu0 %v483, 64
        %v807 = vpop.permute.xlu0 %806
        %v810 = vsel %vm501, %v743, 0
        %812 = vmatpush.msra.mxu0 0.0
        %813 = vmatpush.msra.mxu0 0.0
        %814 = vmatpush.msra.mxu0 0.0
        %815 = vmatpush.msra.mxu0 0.0
        %816 = vmatpush.msra.mxu0 0.0
        %817 = vmatpush.msra.mxu0 0.0
        %818 = vmatpush.msra.mxu0 0.0
        %819 = vmatpush.msra.mxu0 0.0
        %820 = vmatpush.msra.mxu0 0.0
        %821 = vmatpush.msra.mxu0 0.0
        %822 = vmatpush.msra.mxu0 0.0
        %823 = vmatpush.msra.mxu0 0.0
        %824 = vmatpush.msra.mxu0 0.0
        %825 = vmatpush.msra.mxu0 0.0
        %826 = vmatpush.msra.mxu0 0.0
        %827 = vmatpush.msra.mxu0 %v807
        %828 = vmatmul.f32.gmra.mxu0 %v810
        %v829 = vpop.f32.mrf.mxu0
        %v830 = vadd.f32 0.0, %v829
        %831 = vdwg.mxu0
        %832 = vrot.lane.b32.xlu0 %v488, 64
        %v833 = vpop.permute.xlu0 %832
        %v836 = vsel %vm501, %v745, 0
        %838 = vmatpush.msra.mxu0 0.0
        %839 = vmatpush.msra.mxu0 0.0
        %840 = vmatpush.msra.mxu0 0.0
        %841 = vmatpush.msra.mxu0 0.0
        %842 = vmatpush.msra.mxu0 0.0
        %843 = vmatpush.msra.mxu0 0.0
        %844 = vmatpush.msra.mxu0 0.0
        %845 = vmatpush.msra.mxu0 0.0
        %846 = vmatpush.msra.mxu0 0.0
        %847 = vmatpush.msra.mxu0 0.0
        %848 = vmatpush.msra.mxu0 0.0
        %849 = vmatpush.msra.mxu0 0.0
        %850 = vmatpush.msra.mxu0 0.0
        %851 = vmatpush.msra.mxu0 0.0
        %852 = vmatpush.msra.mxu0 0.0
        %853 = vmatpush.msra.mxu0 %v833
        %854 = vmatmul.f32.gmra.mxu0 %v836
        %v855 = vpop.f32.mrf.mxu0
        %v856 = vadd.f32 0.0, %v855
        %857 = vdwg.mxu0
        %858 = vrot.lane.b32.xlu0 %v490, 64
        %v859 = vpop.permute.xlu0 %858
        %v862 = vsel %vm501, %v747, 0
        %864 = vmatpush.msra.mxu0 0.0
        %865 = vmatpush.msra.mxu0 0.0
        %866 = vmatpush.msra.mxu0 0.0
        %867 = vmatpush.msra.mxu0 0.0
        %868 = vmatpush.msra.mxu0 0.0
        %869 = vmatpush.msra.mxu0 0.0
        %870 = vmatpush.msra.mxu0 0.0
        %871 = vmatpush.msra.mxu0 0.0
        %872 = vmatpush.msra.mxu0 0.0
        %873 = vmatpush.msra.mxu0 0.0
        %874 = vmatpush.msra.mxu0 0.0
        %875 = vmatpush.msra.mxu0 0.0
        %876 = vmatpush.msra.mxu0 0.0
        %877 = vmatpush.msra.mxu0 0.0
        %878 = vmatpush.msra.mxu0 0.0
        %879 = vmatpush.msra.mxu0 %v859
        %880 = vmatmul.f32.gmra.mxu0 %v862
        %v881 = vpop.f32.mrf.mxu0
        %v882 = vadd.f32 0.0, %v881
        %883 = vdwg.mxu0
        %884 = vrot.lane.b32.xlu0 %v492, 64
        %v885 = vpop.permute.xlu0 %884
        %v888 = vsel %vm501, %v749, 0
        %890 = vmatpush.msra.mxu0 0.0
        %891 = vmatpush.msra.mxu0 0.0
        %892 = vmatpush.msra.mxu0 0.0
        %893 = vmatpush.msra.mxu0 0.0
        %894 = vmatpush.msra.mxu0 0.0
        %895 = vmatpush.msra.mxu0 0.0
        %896 = vmatpush.msra.mxu0 0.0
        %897 = vmatpush.msra.mxu0 0.0
        %898 = vmatpush.msra.mxu0 0.0
        %899 = vmatpush.msra.mxu0 0.0
        %900 = vmatpush.msra.mxu0 0.0
        %901 = vmatpush.msra.mxu0 0.0
        %902 = vmatpush.msra.mxu0 0.0
        %903 = vmatpush.msra.mxu0 0.0
        %904 = vmatpush.msra.mxu0 0.0
        %905 = vmatpush.msra.mxu0 %v885
        %906 = vmatmul.f32.gmra.mxu0 %v888
        %v907 = vpop.f32.mrf.mxu0
        %v908 = vadd.f32 0.0, %v907
        %909 = vdwg.mxu0
        %910 = vrot.lane.b32.xlu0 %v494, 64
        %v911 = vpop.permute.xlu0 %910
        %v914 = vsel %vm501, %v751, 0
        %916 = vmatpush.msra.mxu0 0.0
        %917 = vmatpush.msra.mxu0 0.0
        %918 = vmatpush.msra.mxu0 0.0
        %919 = vmatpush.msra.mxu0 0.0
        %920 = vmatpush.msra.mxu0 0.0
        %921 = vmatpush.msra.mxu0 0.0
        %922 = vmatpush.msra.mxu0 0.0
        %923 = vmatpush.msra.mxu0 0.0
        %924 = vmatpush.msra.mxu0 0.0
        %925 = vmatpush.msra.mxu0 0.0
        %926 = vmatpush.msra.mxu0 0.0
        %927 = vmatpush.msra.mxu0 0.0
        %928 = vmatpush.msra.mxu0 0.0
        %929 = vmatpush.msra.mxu0 0.0
        %930 = vmatpush.msra.mxu0 0.0
        %931 = vmatpush.msra.mxu0 %v911
        %932 = vmatmul.f32.gmra.mxu0 %v914
        %v933 = vpop.f32.mrf.mxu0
        %v934 = vadd.f32 0.0, %v933
        %935 = vdwg.mxu0
        %936 = vrot.lane.b32.xlu0 %v496, 64
        %v937 = vpop.permute.xlu0 %936
        %v940 = vsel %vm501, %v753, 0
        %942 = vmatpush.msra.mxu0 0.0
        %943 = vmatpush.msra.mxu0 0.0
        %944 = vmatpush.msra.mxu0 0.0
        %945 = vmatpush.msra.mxu0 0.0
        %946 = vmatpush.msra.mxu0 0.0
        %947 = vmatpush.msra.mxu0 0.0
        %948 = vmatpush.msra.mxu0 0.0
        %949 = vmatpush.msra.mxu0 0.0
        %950 = vmatpush.msra.mxu0 0.0
        %951 = vmatpush.msra.mxu0 0.0
        %952 = vmatpush.msra.mxu0 0.0
        %953 = vmatpush.msra.mxu0 0.0
        %954 = vmatpush.msra.mxu0 0.0
        %955 = vmatpush.msra.mxu0 0.0
        %956 = vmatpush.msra.mxu0 0.0
        %957 = vmatpush.msra.mxu0 %v937
        %958 = vmatmul.f32.gmra.mxu0 %v940
        %v959 = vpop.f32.mrf.mxu0
        %v960 = vadd.f32 0.0, %v959
        %961 = vdwg.mxu0
        %962 = vrot.lane.b32.xlu0 %v498, 64
        %v963 = vpop.permute.xlu0 %962
        %v966 = vsel %vm501, %v755, 0
        %968 = vmatpush.msra.mxu0 0.0
        %969 = vmatpush.msra.mxu0 0.0
        %970 = vmatpush.msra.mxu0 0.0
        %971 = vmatpush.msra.mxu0 0.0
        %972 = vmatpush.msra.mxu0 0.0
        %973 = vmatpush.msra.mxu0 0.0
        %974 = vmatpush.msra.mxu0 0.0
        %975 = vmatpush.msra.mxu0 0.0
        %976 = vmatpush.msra.mxu0 0.0
        %977 = vmatpush.msra.mxu0 0.0
        %978 = vmatpush.msra.mxu0 0.0
        %979 = vmatpush.msra.mxu0 0.0
        %980 = vmatpush.msra.mxu0 0.0
        %981 = vmatpush.msra.mxu0 0.0
        %982 = vmatpush.msra.mxu0 0.0
        %983 = vmatpush.msra.mxu0 %v963
        %984 = vmatmul.f32.gmra.mxu0 %v966
        %v985 = vpop.f32.mrf.mxu0
        %v986 = vadd.f32 0.0, %v985
        %987 = vdwg.mxu0
        %v988 = vrcp.pop %v758
        %v989 = vrcp.pop %v761
        %v990 = vrcp.pop %v764
        %v991 = vrcp.pop %v767
        %v992 = vrcp.pop %v770
        %v993 = vrcp.pop %v773
        %v994 = vrcp.pop %v776
        %v995 = vrcp.pop %v779
        %v996 = vmul.f32 %v758, %v988
        %v997 = vmul.f32 %v761, %v989
        %v998 = vmul.f32 %v764, %v990
        %v999 = vmul.f32 %v767, %v991
        %v1000 = vmul.f32 %v770, %v992
        %v1001 = vmul.f32 %v773, %v993
        %v1002 = vmul.f32 %v776, %v994
        %v1003 = vmul.f32 %v779, %v995
        %v1004 = vsub.f32 2.0, %v996
        %v1005 = vsub.f32 2.0, %v997
        %v1006 = vsub.f32 2.0, %v998
        %v1007 = vsub.f32 2.0, %v999
        %v1008 = vsub.f32 2.0, %v1000
        %v1009 = vsub.f32 2.0, %v1001
        %v1010 = vsub.f32 2.0, %v1002
        %v1011 = vsub.f32 2.0, %v1003
        %v1012 = vmul.f32 %v988, %v1004
        %v1013 = vmul.f32 %v989, %v1005
        %v1014 = vmul.f32 %v990, %v1006
        %v1015 = vmul.f32 %v991, %v1007
        %v1016 = vmul.f32 %v992, %v1008
        %v1017 = vmul.f32 %v993, %v1009
        %v1018 = vmul.f32 %v994, %v1010
        %v1019 = vmul.f32 %v995, %v1011
        %v1020 = vmul.f32 %v804, %v1012
        %v1021 = vmul.f32 %v830, %v1013
        %v1022 = vmul.f32 %v856, %v1014
        %v1023 = vmul.f32 %v882, %v1015
        %v1024 = vmul.f32 %v908, %v1016
        %v1025 = vmul.f32 %v934, %v1017
        %v1026 = vmul.f32 %v960, %v1018
        %v1027 = vmul.f32 %v986, %v1019
        %1030 = vrot.lane.b32.xlu0 %v1022, 8
        %v1031 = vpop.permute.xlu0 %1030
        %1032 = vrot.lane.b32.xlu0 %v1023, 8
        %v1033 = vpop.permute.xlu0 %1032
        %1038 = vrot.lane.b32.xlu0 %v1024, 16
        %v1039 = vpop.permute.xlu0 %1038
        %1040 = vrot.lane.b32.xlu0 %v1025, 16
        %v1041 = vpop.permute.xlu0 %1040
        %1046 = vrot.lane.b32.xlu0 %v1026, 24
        %v1047 = vpop.permute.xlu0 %1046
        %1048 = vrot.lane.b32.xlu0 %v1027, 24
        %v1049 = vpop.permute.xlu0 %1048
        %v1052 = vsel %vm501, %v1020, %v1031
        %v1053 = vsel %vm501, %v1021, %v1033
        %vm1054 = vcmask 130048
        %v1055 = vsel %vm1054, %v1052, %v1039
        %v1056 = vsel %vm1054, %v1053, %v1041
        %vm1057 = vcmask 195584
        %v1058 = vsel %vm1057, %v1055, %v1047
        %v1059 = vsel %vm1057, %v1056, %v1049
        %v1060 = vld [vmem:[%s369] sm:$0xff]
        %v1061 = vld [vmem:[%s369 + $0x8] sm:$0xff]
        %v1062 = vld [vmem:[%s369 + $0x10] sm:$0xff]
        %v1063 = vld [vmem:[%s369 + $0x18] sm:$0xff]
        %v1064 = vperm.slane %v390, 4
        %v1066 = vsel %vm393, %v1058, 0
        %v1069 = vsel %vm393, %v1059, 0
        %1071 = vmatpush.msra.mxu0 0.0
        %1072 = vmatpush.msra.mxu0 0.0
        %1073 = vmatpush.msra.mxu0 0.0
        %1074 = vmatpush.msra.mxu0 0.0
        %1075 = vmatpush.msra.mxu0 0.0
        %1076 = vmatpush.msra.mxu0 0.0
        %1077 = vmatpush.msra.mxu0 0.0
        %1078 = vmatpush.msra.mxu0 0.0
        %1079 = vmatpush.msra.mxu0 0.0
        %1080 = vmatpush.msra.mxu0 0.0
        %1081 = vmatpush.msra.mxu0 0.0
        %1082 = vmatpush.msra.mxu0 0.0
        %1083 = vmatpush.msra.mxu0 %v1063
        %1084 = vmatpush.msra.mxu0 %v1062
        %1085 = vmatpush.msra.mxu0 %v1061
        %1086 = vmatpush.msra.mxu0 %v1060
        %1087 = vmatmul.f32.gmra.mxu0 %v1066
        %v1088 = vpop.f32.mrf.mxu0
        %v1089 = vadd.f32 %v1064, %v1088
        %1090 = vmatmul.f32.gmra.mxu0 %v1069
        %v1091 = vpop.f32.mrf.mxu0
        %v1092 = vadd.f32 %v1064, %v1091
        %1093 = vdwg.mxu0
        %v1094 = vadd.f32 %v391, %v1089
        %v1095 = vadd.f32 %v392, %v1092
        %v1096 = vsel %vm393, %v1094, 0.0
        %1097 = vadd.xlane.f32.xlu0 %v1096
        %v1098 = vpop.xlane.xlu0 %1097
        %v1099 = vsel %vm393, %v1095, 0.0
        %1100 = vadd.xlane.f32.xlu0 %v1099
        %v1101 = vpop.xlane.xlu0 %1100
        %v1102 = vmul.f32 %v1098, %v406
        %v1103 = vmul.f32 %v1101, %v406
        %v1104 = vsub.f32 %v1094, %v1102
        %v1105 = vsub.f32 %v1095, %v1103
        %v1106 = vmul.f32 %v1104, %v1104
        %v1107 = vmul.f32 %v1105, %v1105
        %v1108 = vsel %vm393, %v1106, 0.0
        %1109 = vadd.xlane.f32.xlu0 %v1108
        %v1110 = vpop.xlane.xlu0 %1109
        %v1111 = vsel %vm393, %v1107, 0.0
        %1112 = vadd.xlane.f32.xlu0 %v1111
        %v1113 = vpop.xlane.xlu0 %1112
        %v1114 = vmul.f32 %v1110, %v406
        %v1115 = vmul.f32 %v1113, %v406
        %v1116 = vadd.f32 %v1114, 1e-05
        %v1117 = vadd.f32 %v1115, 1e-05
        %v1118 = vrsqrt.pop %v1116
        %v1119 = vmul.f32 %v1118, %v1116
        %v1120 = vmul.f32 %v1119, %v1118
        %v1121 = vmul.f32 0.5, %v1120
        %v1122 = vsub.f32 1.5, %v1121
        %v1123 = vmul.f32 %v1118, %v1122
        %vm1124 = vweird.f32 %v1116
        %vm1125 = vweird.f32 %v1118
        %vm1126 = vmor %vm1124, %vm1125
        %v1127 = vsel %vm1126, %v1118, %v1123
        %v1128 = vrsqrt.pop %v1117
        %v1129 = vmul.f32 %v1128, %v1117
        %v1130 = vmul.f32 %v1129, %v1128
        %v1131 = vmul.f32 0.5, %v1130
        %v1132 = vsub.f32 1.5, %v1131
        %v1133 = vmul.f32 %v1128, %v1132
        %vm1134 = vweird.f32 %v1117
        %vm1135 = vweird.f32 %v1128
        %vm1136 = vmor %vm1134, %vm1135
        %v1137 = vsel %vm1136, %v1128, %v1133
        %v1138 = vmul.f32 %v1104, %v1127
        %v1139 = vmul.f32 %v1105, %v1137
        %v1140 = vperm.slane %v390, 2
        %v1141 = vmul.f32 %v1138, %v1140
        %v1142 = vmul.f32 %v1139, %v1140
        %v1143 = vperm.slane %v390, 3
        %v1144 = vadd.f32 %v1141, %v1143
        %v1145 = vadd.f32 %v1142, %v1143
        %v1146 = vld [vmem:[%s374] sm:$0xff]
        %v1147 = vld [vmem:[%s374 + $0x8] sm:$0xff]
        %v1148 = vld [vmem:[%s374 + $0x10] sm:$0xff]
        %v1149 = vld [vmem:[%s374 + $0x18] sm:$0xff]
        %v1150 = vperm.slane %v390, 6
        %v1152 = vsel %vm393, %v1144, 0
        %v1155 = vsel %vm393, %v1145, 0
        %1157 = vmatpush.msra.mxu0 0.0
        %1158 = vmatpush.msra.mxu0 0.0
        %1159 = vmatpush.msra.mxu0 0.0
        %1160 = vmatpush.msra.mxu0 0.0
        %1161 = vmatpush.msra.mxu0 0.0
        %1162 = vmatpush.msra.mxu0 0.0
        %1163 = vmatpush.msra.mxu0 0.0
        %1164 = vmatpush.msra.mxu0 0.0
        %1165 = vmatpush.msra.mxu0 0.0
        %1166 = vmatpush.msra.mxu0 0.0
        %1167 = vmatpush.msra.mxu0 0.0
        %1168 = vmatpush.msra.mxu0 0.0
        %1169 = vmatpush.msra.mxu0 %v1149
        %1170 = vmatpush.msra.mxu0 %v1148
        %1171 = vmatpush.msra.mxu0 %v1147
        %1172 = vmatpush.msra.mxu0 %v1146
        %1173 = vmatmul.f32.gmra.mxu0 %v1152
        %v1174 = vpop.f32.mrf.mxu0
        %v1175 = vadd.f32 %v1150, %v1174
        %1176 = vmatmul.f32.gmra.mxu0 %v1155
        %v1177 = vpop.f32.mrf.mxu0
        %v1178 = vadd.f32 %v1150, %v1177
        %1179 = vdwg.mxu0
        %v1180 = vmax.f32 %v1175, 0.0
        %v1181 = vmax.f32 %v1178, 0.0
        %v1182 = vld [vmem:[%s379] sm:$0xff]
        %v1183 = vld [vmem:[%s379 + $0x8] sm:$0xff]
        %v1184 = vld [vmem:[%s379 + $0x10] sm:$0xff]
        %v1185 = vld [vmem:[%s379 + $0x18] sm:$0xff]
        %v1186 = vld [vmem:[%s379 + $0x20] sm:$0xff]
        %v1187 = vld [vmem:[%s379 + $0x28] sm:$0xff]
        %v1188 = vld [vmem:[%s379 + $0x30] sm:$0xff]
        %v1189 = vld [vmem:[%s379 + $0x38] sm:$0xff]
        %v1190 = vperm.slane %v390, 5
        %vm1191 = vcmask 523264
        %v1193 = vsel %vm1191, %v1180, 0
        %v1196 = vsel %vm1191, %v1181, 0
        %1198 = vmatpush.msra.mxu0 0.0
        %1199 = vmatpush.msra.mxu0 0.0
        %1200 = vmatpush.msra.mxu0 0.0
        %1201 = vmatpush.msra.mxu0 0.0
        %1202 = vmatpush.msra.mxu0 0.0
        %1203 = vmatpush.msra.mxu0 0.0
        %1204 = vmatpush.msra.mxu0 0.0
        %1205 = vmatpush.msra.mxu0 0.0
        %1206 = vmatpush.msra.mxu0 %v1189
        %1207 = vmatpush.msra.mxu0 %v1188
        %1208 = vmatpush.msra.mxu0 %v1187
        %1209 = vmatpush.msra.mxu0 %v1186
        %1210 = vmatpush.msra.mxu0 %v1185
        %1211 = vmatpush.msra.mxu0 %v1184
        %1212 = vmatpush.msra.mxu0 %v1183
        %1213 = vmatpush.msra.mxu0 %v1182
        %1214 = vmatmul.f32.gmra.mxu0 %v1193
        %v1215 = vpop.f32.mrf.mxu0
        %v1216 = vadd.f32 %v1190, %v1215
        %1217 = vmatmul.f32.gmra.mxu0 %v1196
        %v1218 = vpop.f32.mrf.mxu0
        %v1219 = vadd.f32 %v1190, %v1218
        %1220 = vdwg.mxu0
        %v1221 = vadd.f32 %v1094, %v1216
        %v1222 = vadd.f32 %v1095, %v1219
        %1223 = vst.msk [vmem:[#allocation7] sm:$0xff] %vm393, %v1221
        %1224 = vst.msk [vmem:[#allocation7 + $0x8] sm:$0xff] %vm393, %v1222
        // Predicated region
        $region57: #{tpu_custom_call.1} parent=43 // pred_check
          %p1225 = pneg %p208
        $region58: #{tpu_custom_call.1} parent=43 // pred_check_branch
          %1227 = sbr.rel (%p1225) target = $region60
        $region59: #{tpu_custom_call.1} parent=43 // pred_region
          %s1228 = smul.u32 2, %s26
          %1230 = vsyncadd [#allocation4], 0
          %s1231 = smul.addr %s1228, 8
          %s1232 = scalar_lea.hbm %s6, %s1231
          %s1233 = sshll.u32 [#allocation7], 4
          %s1234 = int_to_ptr.vmem [resolvable:$true] %s1233
          %s1235 = sshll.u32 %s1232, 4
          %s1236 = int_to_ptr.hbm [resolvable:$true] %s1235
          %1241 = dma.vmem_to_hbm [thread:$0]  %s1234, 256, %s1236, [#allocation4], 128, 128, 8
        $region60: #{tpu_custom_call.1} parent=43 // pred_fallthru
          _
        // Predicated region
        $region61: #{tpu_custom_call.1} parent=43 // pred_check
          %p1242 = pneg %p208
        $region62: #{tpu_custom_call.1} parent=43 // pred_check_branch
          %1244 = sbr.rel (%p1242) target = $region64
        $region63: #{tpu_custom_call.1} parent=43 // pred_region
          %1246 = dma.done [#allocation4], 256
        $region64: #{tpu_custom_call.1} parent=43 // pred_fallthru
          _
      $region44: #{tpu_custom_call.1} parent=5 // pred_fallthru
        _
      %p1247 = scmp.le.s32.totalorder 2, %s17
      // Predicated region
      $region65: #{tpu_custom_call.1} parent=5 // pred_check
        %p1248 = pneg %p1247
      $region66: #{tpu_custom_call.1} parent=5 // pred_check_branch
        %1250 = sbr.rel (%p1248) target = $region68
      $region67: #{tpu_custom_call.1} parent=5 // pred_region
        %s1251 = ssub.s32 %s17, 2
      $region68: #{tpu_custom_call.1} parent=5 // pred_fallthru
        _
    $region6: #{tpu_custom_call.1} parent=1 // loop_footer
      %s21 = sadd.s32 1, %s17
    $region7: #{tpu_custom_call.1} parent=1 // loop_footer_branch
      %16 = sbr.rel target = $region3
    $region8: #{tpu_custom_call.1} parent=1 // loop_exit
      _
    %1252 = vsyncpa [#allocation3], 1
    %s1253 = scalar_lea.sflag [#allocation3], 1
    %1254 = vsyncpa %s1253, 1
    %1255 = vsyncpa [#allocation6], 1
    %s1256 = scalar_lea.sflag [#allocation6], 1
    %1257 = vsyncpa %s1256, 1
    %1258 = vsyncpa [#allocation4], 1
    %s1259 = scalar_lea.sflag [#allocation4], 1
    %1260 = vsyncpa %s1259, 1

</llo_original>
